<compile_context>
chip_gen: v5e
topology: v5e:2x2
jax: 0.10.0
libtpu: 0.0.40
codegen_flags: <defaults>
</compile_context>

<pallas_src>
import jax
import jax.numpy as jnp
from jax import lax
from jax.experimental import pallas as pl
from jax.experimental.pallas import tpu as pltpu

_PREC_HIGH = jax.lax.Precision.HIGHEST


# ----------------------------- recurrence kernel -----------------------------
def _bwd_scan_kernel(x_ref,                    # (Bb, Tc, H) batch-first block, MXU dtype
                     wih_ref, whh_ref,         # (H, 4H), (H, 4H)   MXU dtype
                     bias_ref,                 # (1, 4H)            f32 (bih + bhh)
                     hout_ref,                 # (Bb, H)            f32: h_bwd at t=0
                     h_ref, c_ref):            # VMEM scratch carries, (Bb, H) f32
    chunk = pl.program_id(1)
    Bb, Tc, H = x_ref.shape
    mxu_dtype = whh_ref.dtype
    dot_prec = _PREC_HIGH if mxu_dtype == jnp.float32 else None

    @pl.when(chunk == 0)
    def _init():
        h_ref[...] = jnp.zeros_like(h_ref)
        c_ref[...] = jnp.zeros_like(c_ref)

    # Hoisted input projection (+ combined bias): one big MXU matmul per chunk instead of
    # Tc small ones on the serial chain.  t_chunk % 8 == 0 keeps the reshapes tile-aligned.
    x_blk = x_ref[...]
    xg = (jnp.dot(x_blk.reshape(Bb * Tc, H), wih_ref[...],
                  preferred_element_type=jnp.float32, precision=dot_prec)
          + bias_ref[...]).reshape(Bb, Tc, 4 * H)            # (Bb, Tc, 4H) f32

    whh = whh_ref[...]

    # Two independent batch sub-tiles (when Bb >= 16): the W_hh matmul of one sub-tile
    # overlaps the sigmoid/tanh/elementwise of the other on the serial chain.
    n_sub = 2 if (Bb >= 16 and Bb % 16 == 0) else 1
    sub = Bb // n_sub
    hs = [h_ref[s * sub:(s + 1) * sub, :] for s in range(n_sub)]
    cs = [c_ref[s * sub:(s + 1) * sub, :] for s in range(n_sub)]

    # Reverse-time recurrence, fully unrolled (the wrapper caps Tc at 16 so the unroll
    # stays short and vreg live ranges stay bounded).
    # TODO(synk): for Tc >= 32 switch to lax.fori_loop(unroll=4) over an xg scratch ref.
    for t in range(Tc - 1, -1, -1):
        for s in range(n_sub):
            h, c = hs[s], cs[s]
            gates = (xg[s * sub:(s + 1) * sub, t, :]
                     + jnp.dot(h.astype(mxu_dtype), whh,
                               preferred_element_type=jnp.float32, precision=dot_prec))
            # PyTorch gate order: i, f, g, o.  Gate math in f32 (exact on v5e).
            # TODO(synk): optional bf16 EUP gates on v6e/v7x (2x packing) at some accuracy cost.
            i = jax.nn.sigmoid(gates[:, 0 * H:1 * H])
            f = jax.nn.sigmoid(gates[:, 1 * H:2 * H])
            g = jnp.tanh(gates[:, 2 * H:3 * H])
            o = jax.nn.sigmoid(gates[:, 3 * H:4 * H])
            cs[s] = f * c + i * g
            hs[s] = o * jnp.tanh(cs[s])

    for s in range(n_sub):
        sl = slice(s * sub, (s + 1) * sub)
        h_ref[sl, :] = hs[s]
        c_ref[sl, :] = cs[s]
        # Output block index is constant along the time axis, so the block stays resident
        # in VMEM; only the value written after the last chunk is flushed to HBM.
        hout_ref[sl, :] = hs[s]


# ----------------------------- head kernel (fwd t=0 step + classifier) ----------------
def _head_kernel(x0_ref,                       # (Bb, H)  MXU dtype, x[:, 0, :]
                 hbwd_ref,                     # (Bb, H)  f32, backward hidden at t=0
                 wih_f_ref, b_f_ref,           # (H, 4H) MXU dtype, (1, 4H) f32
                 wcls_f_ref, wcls_b_ref,       # (1, H) f32 classifier rows
                 bcls_ref,                     # (1, 1) f32
                 out_ref):                     # (Bb, 1) f32
    H = hbwd_ref.shape[-1]
    dot_prec = _PREC_HIGH if wih_f_ref.dtype == jnp.float32 else None
    # Forward direction at t=0 from the zero state: W_hh term vanishes, f-gate irrelevant.
    gates = (jnp.dot(x0_ref[...], wih_f_ref[...],
                     preferred_element_type=jnp.float32, precision=dot_prec)
             + b_f_ref[...])
    i = jax.nn.sigmoid(gates[:, 0 * H:1 * H])
    g = jnp.tanh(gates[:, 2 * H:3 * H])
    o = jax.nn.sigmoid(gates[:, 3 * H:4 * H])
    h_fwd = o * jnp.tanh(i * g)
    # Classifier Linear(2H -> 1): VPU multiply + row reduce (avoids an N=1 MXU matmul).
    out_ref[...] = (jnp.sum(h_fwd * wcls_f_ref[...], axis=-1, keepdims=True)
                    + jnp.sum(hbwd_ref[...] * wcls_b_ref[...], axis=-1, keepdims=True)
                    + bcls_ref[...])


# ----------------------------- tile / VMEM policy -----------------------------
def _vmem_budget_bytes():
    try:
        physical = int(pltpu.get_tpu_info().vmem_capacity_bytes)
    except Exception:
        physical = 64 << 20        # conservative (v7x-sized) fallback
    # ~0.85 * physical, capped at 112 MiB (leaves headroom on 128 MiB v5e/v6e parts).
    return min(int(physical * 0.85), 112 << 20)


def _resident_bytes(b_block, t_chunk, H, mxu_itemsize):
    f32 = 4
    return int(
        2 * b_block * t_chunk * H * mxu_itemsize     # x block, double-buffered
        + 2 * H * 4 * H * mxu_itemsize               # wih_b + whh_b (single-buffered)
        + 2 * 4 * H * f32                            # combined bias
        + b_block * t_chunk * 4 * H * f32            # hoisted xg slab (live f32 value)
        + 2 * 2 * b_block * H * f32                  # h/c scratch
        + 2 * b_block * H * f32                      # resident output block
        + 8 * b_block * 4 * H * f32                  # gate-temporary headroom
    )


def _choose_tiles(B, T, H, budget, mxu_itemsize):
    # Time-chunk candidates: multiples of 8 (tile-aligned reshapes, short unroll).
    t_cands = [c for c in (16, 8) if T >= c and T % c == 0] or [T]
    # Batch-block candidates: prefer >= 2 blocks on the parallel axis (v7x: 2 TensorCores);
    # blocks must divide B and be a multiple of 8 (or equal B).
    b_cands = []
    if B >= 16 and B % 2 == 0 and (B // 2) % 8 == 0:
        b_cands.append(B // 2)
    if B not in b_cands:
        b_cands.append(B)
    for d in (128, 64, 32, 16, 8):
        if d < B and B % d == 0 and d not in b_cands:
            b_cands.append(d)
    for b in b_cands:
        for t in t_cands:
            if _resident_bytes(b, t, H, mxu_itemsize) <= budget:
                return b, t
    return b_cands[-1], t_cands[-1]


# ----------------------------- wrapper -----------------------------
def bilstm_forward(x, params, *, t_chunk=None, b_block=None, mxu_dtype=jnp.bfloat16):
    """x: (B, T, H) batch-first float32; params: dict of PyTorch-shaped weights."""
    B, T, H = x.shape
    mxu_dtype = jnp.dtype(mxu_dtype)
    msz = mxu_dtype.itemsize

    budget = _vmem_budget_bytes()
    auto_b, auto_t = _choose_tiles(B, T, H, budget, msz)
    if b_block is None:
        b_block = auto_b
    if t_chunk is None:
        t_chunk = auto_t
    if T % t_chunk != 0 or (t_chunk != T and t_chunk % 8 != 0):
        t_chunk = T
    if B % b_block != 0 or (b_block != B and b_block % 8 != 0):
        b_block = B
    n_chunks = T // t_chunk
    n_bblocks = B // b_block

    # PyTorch -> kernel weight layout (pre-transposed so kernels do (rows, H) @ (H, 4H)).
    wih_f = params["weight_ih_l0"].T.astype(mxu_dtype)                        # (H, 4H)
    b_f = (params["bias_ih_l0"] + params["bias_hh_l0"]).reshape(1, 4 * H).astype(jnp.float32)
    wih_b = params["weight_ih_l0_reverse"].T.astype(mxu_dtype)                # (H, 4H)
    whh_b = params["weight_hh_l0_reverse"].T.astype(mxu_dtype)                # (H, 4H)
    b_b = (params["bias_ih_l0_reverse"]
           + params["bias_hh_l0_reverse"]).reshape(1, 4 * H).astype(jnp.float32)

    w_cls = params["classifier_weight"]                                       # (out, 2H)
    assert w_cls.shape[0] == 1, "kernel classifier assumes module default output=1"
    wcls_f = w_cls[:, :H].astype(jnp.float32)                                 # (1, H)
    wcls_b = w_cls[:, H:].astype(jnp.float32)                                 # (1, H)
    bcls = params["classifier_bias"].reshape(1, 1).astype(jnp.float32)        # (1, 1)

    x_mxu = x.astype(mxu_dtype)                                               # (B, T, H)
    x0 = x_mxu[:, 0, :]                                                       # (B, H)

    resident = _resident_bytes(b_block, t_chunk, H, msz)
    vmem_limit = int(min(max(int(1.5 * resident), 32 << 20), budget))

    const2d = lambda b, c: (0, 0)
    in_specs = [
        # x streamed over a REVERSED time-chunk axis (backward scan), batch-first layout.
        pl.BlockSpec((b_block, t_chunk, H), lambda b, c: (b, n_chunks - 1 - c, 0)),
        # Constant-index weights: single-buffered (no duplicate VMEM copy).
        pl.BlockSpec((H, 4 * H), const2d, pipeline_mode=pl.Buffered(1)),      # wih_b
        pl.BlockSpec((H, 4 * H), const2d, pipeline_mode=pl.Buffered(1)),      # whh_b
        pl.BlockSpec((1, 4 * H), const2d),                                    # b_b
    ]
    out_specs = pl.BlockSpec((b_block, H), lambda b, c: (b, 0))

    flops_a = 2 * (2 * B * T * H * 4 * H)          # input projection + recurrent matmuls
    trans_a = 5 * B * T * H
    bytes_a = int(B * T * H * msz + 2 * H * 4 * H * msz + 4 * H * 4 + B * H * 4)

    h_bwd = pl.pallas_call(
        _bwd_scan_kernel,
        out_shape=jax.ShapeDtypeStruct((B, H), jnp.float32),
        grid_spec=pltpu.PrefetchScalarGridSpec(
            num_scalar_prefetch=0,
            grid=(n_bblocks, n_chunks),
            in_specs=in_specs,
            out_specs=out_specs,
            scratch_shapes=[pltpu.VMEM((b_block, H), jnp.float32),
                            pltpu.VMEM((b_block, H), jnp.float32)],
        ),
        compiler_params=pltpu.CompilerParams(
            dimension_semantics=("parallel", "arbitrary"),
            vmem_limit_bytes=vmem_limit),
        cost_estimate=pl.CostEstimate(flops=flops_a, transcendentals=trans_a,
                                      bytes_accessed=bytes_a),
    )(x_mxu, wih_b, whh_b, b_b)

    # Tiny head kernel: forward-direction t=0 step + classifier.
    head_const = lambda b: (0, 0)
    logits = pl.pallas_call(
        _head_kernel,
        out_shape=jax.ShapeDtypeStruct((B, 1), jnp.float32),
        grid_spec=pltpu.PrefetchScalarGridSpec(
            num_scalar_prefetch=0,
            grid=(n_bblocks,),
            in_specs=[
                pl.BlockSpec((b_block, H), lambda b: (b, 0)),                 # x0
                pl.BlockSpec((b_block, H), lambda b: (b, 0)),                 # h_bwd
                pl.BlockSpec((H, 4 * H), head_const, pipeline_mode=pl.Buffered(1)),  # wih_f
                pl.BlockSpec((1, 4 * H), head_const),                         # b_f
                pl.BlockSpec((1, H), head_const),                             # wcls_f
                pl.BlockSpec((1, H), head_const),                             # wcls_b
                pl.BlockSpec((1, 1), head_const),                             # bcls
            ],
            out_specs=pl.BlockSpec((b_block, 1), lambda b: (b, 0)),
        ),
        compiler_params=pltpu.CompilerParams(dimension_semantics=("parallel",)),
        cost_estimate=pl.CostEstimate(
            flops=2 * B * H * 4 * H + 8 * B * H,
            transcendentals=4 * B * H,
            bytes_accessed=int(2 * B * H * 4 + H * 4 * H * msz + 6 * H * 4 + B * 4)),
    )(x0, h_bwd, wih_f, b_f, wcls_f, wcls_b, bcls)
    return logits


# ----------------------------- pure-JAX reference -----------------------------
def _ref_lstm_dir(x, wih, whh, bih, bhh):
    B, T, H = x.shape

    def step(carry, x_t):
        h, c = carry
        gates = (jnp.dot(x_t, wih.T, precision=_PREC_HIGH)
                 + jnp.dot(h, whh.T, precision=_PREC_HIGH) + bih + bhh)
        i = jax.nn.sigmoid(gates[:, 0 * H:1 * H])
        f = jax.nn.sigmoid(gates[:, 1 * H:2 * H])
        g = jnp.tanh(gates[:, 2 * H:3 * H])
        o = jax.nn.sigmoid(gates[:, 3 * H:4 * H])
        c_new = f * c + i * g
        h_new = o * jnp.tanh(c_new)
        return (h_new, c_new), h_new

    h0 = jnp.zeros((B, H), jnp.float32)
    c0 = jnp.zeros((B, H), jnp.float32)
    _, hs = lax.scan(step, (h0, c0), jnp.transpose(x, (1, 0, 2)))
    return jnp.transpose(hs, (1, 0, 2))  # (B, T, H)


def bilstm_reference(x, params):
    fwd = _ref_lstm_dir(x, params["weight_ih_l0"], params["weight_hh_l0"],
                        params["bias_ih_l0"], params["bias_hh_l0"])
    bwd = _ref_lstm_dir(x[:, ::-1, :], params["weight_ih_l0_reverse"],
                        params["weight_hh_l0_reverse"],
                        params["bias_ih_l0_reverse"], params["bias_hh_l0_reverse"])
    bwd = bwd[:, ::-1, :]
    out = jnp.concatenate([fwd, bwd], axis=-1)          # (B, T, 2H)
    h0 = out[:, 0, :]                                   # (B, 2H)
    return (jnp.dot(h0, params["classifier_weight"].T, precision=_PREC_HIGH)
            + params["classifier_bias"])


# ----------------------------- parameter init -----------------------------
def init_params(key, hidden, out_dim):
    k_lstm = 1.0 / jnp.sqrt(hidden)
    k_cls = 1.0 / jnp.sqrt(2 * hidden)
    names_shapes = [
        ("weight_ih_l0", (4 * hidden, hidden)),
        ("weight_hh_l0", (4 * hidden, hidden)),
        ("bias_ih_l0", (4 * hidden,)),
        ("bias_hh_l0", (4 * hidden,)),
        ("weight_ih_l0_reverse", (4 * hidden, hidden)),
        ("weight_hh_l0_reverse", (4 * hidden, hidden)),
        ("bias_ih_l0_reverse", (4 * hidden,)),
        ("bias_hh_l0_reverse", (4 * hidden,)),
    ]
    keys = jax.random.split(key, len(names_shapes) + 2)
    params = {}
    for (name, shape), kk in zip(names_shapes, keys[:len(names_shapes)]):
        params[name] = jax.random.uniform(kk, shape, jnp.float32, -k_lstm, k_lstm)
    params["classifier_weight"] = jax.random.uniform(
        keys[-2], (out_dim, 2 * hidden), jnp.float32, -k_cls, k_cls)
    params["classifier_bias"] = jax.random.uniform(
        keys[-1], (out_dim,), jnp.float32, -k_cls, k_cls)
    return params


if __name__ == "__main__":
    B, T, H, OUT = 2, 16, 32, 1
    key = jax.random.PRNGKey(0)
    kx, kp = jax.random.split(key)
    x = jax.random.normal(kx, (B, T, H), jnp.float32)     # last_hidden_state
    params = init_params(kp, H, OUT)

    ref = bilstm_reference(x, params)

    # Exact path (f32 MXU operands) — exercises the 2-chunk reversed streaming.
    out_f32 = jax.block_until_ready(
        bilstm_forward(x, params, t_chunk=8, mxu_dtype=jnp.float32))
    assert out_f32.shape == (B, OUT)
    assert jnp.allclose(out_f32, ref, rtol=1e-3, atol=1e-4), (out_f32, ref)

    # Default performance path (bf16 MXU operands, f32 accumulate / gate math).
    # Relaxed tolerance: bf16 operand rounding compounds over the T-step reverse scan.
    out_bf16 = jax.block_until_ready(bilstm_forward(x, params, t_chunk=8))
    assert out_bf16.shape == (B, OUT)
    assert jnp.allclose(out_bf16, ref, rtol=5e-2, atol=5e-2), (out_bf16, ref)

    print("KERNEL_OK")
</pallas_src>

<mosaic_0001>
module attributes {stable_mosaic.version = 11 : i64} {
  func.func @_bwd_scan_kernel(%arg0: i32, %arg1: i32, %arg2: memref<2x8x32xf32, #tpu.memory_space<vmem>>, %arg3: memref<32x128xf32, #tpu.memory_space<vmem>>, %arg4: memref<32x128xf32, #tpu.memory_space<vmem>>, %arg5: memref<1x128xf32, #tpu.memory_space<vmem>>, %arg6: memref<2x32xf32, #tpu.memory_space<vmem>>, %arg7: memref<2x32xf32, #tpu.memory_space<vmem>>, %arg8: memref<2x32xf32, #tpu.memory_space<vmem>>) attributes {dimension_semantics = [#tpu.dimension_semantics<parallel>, #tpu.dimension_semantics<arbitrary>], iteration_bounds = array<i64: 1, 2>, scalar_prefetch = 0 : i64, scratch_operands = 2 : i64, tpu.core_type = #tpu.core_type<tc>, window_params = [{transform_indices = @transform_0, window_bounds = array<i64: 2, 8, 32>}, {pipeline_mode = #tpu.pipeline_mode<synchronous>, transform_indices = @transform_1, window_bounds = array<i64: 32, 128>}, {pipeline_mode = #tpu.pipeline_mode<synchronous>, transform_indices = @transform_2, window_bounds = array<i64: 32, 128>}, {pipeline_mode = #tpu.pipeline_mode<synchronous>, transform_indices = @transform_3, window_bounds = array<i64: 1, 128>}, {transform_indices = @transform_4, window_bounds = array<i64: 2, 32>}]} {
    %c0_i32 = arith.constant 0 : i32
    %0 = arith.cmpi eq, %arg1, %c0_i32 : i32
    %1 = arith.extui %0 : i1 to i32
    %c0_i32_0 = arith.constant 0 : i32
    %2 = arith.cmpi ne, %1, %c0_i32_0 : i32
    scf.if %2 {
      %cst_51 = arith.constant 0.000000e+00 : f32
      %249 = vector.broadcast %cst_51 : f32 to vector<2x32xf32>
      %c0_52 = arith.constant 0 : index
      %c0_53 = arith.constant 0 : index
      %250 = vector.load %arg7[%c0_52, %c0_53] : memref<2x32xf32, #tpu.memory_space<vmem>>, vector<2x32xf32>
      tpu.vector_store %arg7[%c0_52, %c0_53], %249 {strides = array<i32>} : memref<2x32xf32, #tpu.memory_space<vmem>>, vector<2x32xf32>,
      %cst_54 = arith.constant 0.000000e+00 : f32
      %251 = vector.broadcast %cst_54 : f32 to vector<2x32xf32>
      %c0_55 = arith.constant 0 : index
      %c0_56 = arith.constant 0 : index
      %252 = vector.load %arg8[%c0_55, %c0_56] : memref<2x32xf32, #tpu.memory_space<vmem>>, vector<2x32xf32>
      tpu.vector_store %arg8[%c0_55, %c0_56], %251 {strides = array<i32>} : memref<2x32xf32, #tpu.memory_space<vmem>>, vector<2x32xf32>,
    } else {
    }
    %c0 = arith.constant 0 : index
    %c0_1 = arith.constant 0 : index
    %c0_2 = arith.constant 0 : index
    %3 = vector.load %arg2[%c0, %c0_1, %c0_2] : memref<2x8x32xf32, #tpu.memory_space<vmem>>, vector<2x8x32xf32>
    %4 = vector.shape_cast %3 : vector<2x8x32xf32> to vector<16x32xf32>
    %c0_3 = arith.constant 0 : index
    %c0_4 = arith.constant 0 : index
    %5 = vector.load %arg3[%c0_3, %c0_4] : memref<32x128xf32, #tpu.memory_space<vmem>>, vector<32x128xf32>
    %cst = arith.constant dense<0.000000e+00> : vector<16x128xf32>
    %6 = tpu.matmul %4, %5, %cst {dimension_numbers = #tpu.dot_dimension_numbers<[1], [0], [0], [1], [0, 0, 1, 1], [], []>, precision = #tpu.contract_precision<fp32>} : vector<16x32xf32>, vector<32x128xf32>, vector<16x128xf32> -> vector<16x128xf32>
    %c0_5 = arith.constant 0 : index
    %c0_6 = arith.constant 0 : index
    %7 = vector.load %arg5[%c0_5, %c0_6] : memref<1x128xf32, #tpu.memory_space<vmem>>, vector<1x128xf32>
    %8 = vector.broadcast %7 : vector<1x128xf32> to vector<16x128xf32>
    %9 = arith.addf %6, %8 : vector<16x128xf32>
    %10 = vector.shape_cast %9 : vector<16x128xf32> to vector<2x8x128xf32>
    %c0_7 = arith.constant 0 : index
    %c0_8 = arith.constant 0 : index
    %11 = vector.load %arg4[%c0_7, %c0_8] : memref<32x128xf32, #tpu.memory_space<vmem>>, vector<32x128xf32>
    %c0_9 = arith.constant 0 : index
    %c0_10 = arith.constant 0 : index
    %12 = vector.load %arg7[%c0_9, %c0_10] : memref<2x32xf32, #tpu.memory_space<vmem>>, vector<2x32xf32>
    %c0_11 = arith.constant 0 : index
    %c0_12 = arith.constant 0 : index
    %13 = vector.load %arg8[%c0_11, %c0_12] : memref<2x32xf32, #tpu.memory_space<vmem>>, vector<2x32xf32>
    %14 = vector.extract_strided_slice %10 {offsets = [0, 7, 0], sizes = [2, 1, 128], strides = [1, 1, 1]} : vector<2x8x128xf32> to vector<2x1x128xf32>
    %15 = vector.shape_cast %14 : vector<2x1x128xf32> to vector<2x128xf32>
    %cst_13 = arith.constant dense<0.000000e+00> : vector<2x128xf32>
    %16 = tpu.matmul %12, %11, %cst_13 {dimension_numbers = #tpu.dot_dimension_numbers<[1], [0], [0], [1], [0, 0, 1, 1], [], []>, precision = #tpu.contract_precision<fp32>} : vector<2x32xf32>, vector<32x128xf32>, vector<2x128xf32> -> vector<2x128xf32>
    %17 = arith.addf %15, %16 : vector<2x128xf32>
    %18 = vector.extract_strided_slice %17 {offsets = [0, 0], sizes = [2, 32], strides = [1, 1]} : vector<2x128xf32> to vector<2x32xf32>
    %19 = arith.negf %18 : vector<2x32xf32>
    %20 = math.exp %19 : vector<2x32xf32>
    %cst_14 = arith.constant 1.000000e+00 : f32
    %21 = vector.broadcast %cst_14 : f32 to vector<2x32xf32>
    %22 = arith.addf %21, %20 : vector<2x32xf32>
    %23 = arith.divf %21, %22 : vector<2x32xf32>
    %24 = vector.extract_strided_slice %17 {offsets = [0, 32], sizes = [2, 32], strides = [1, 1]} : vector<2x128xf32> to vector<2x32xf32>
    %25 = arith.negf %24 : vector<2x32xf32>
    %26 = math.exp %25 : vector<2x32xf32>
    %cst_15 = arith.constant 1.000000e+00 : f32
    %27 = vector.broadcast %cst_15 : f32 to vector<2x32xf32>
    %28 = arith.addf %27, %26 : vector<2x32xf32>
    %29 = arith.divf %27, %28 : vector<2x32xf32>
    %30 = vector.extract_strided_slice %17 {offsets = [0, 64], sizes = [2, 32], strides = [1, 1]} : vector<2x128xf32> to vector<2x32xf32>
    %31 = math.tanh %30 : vector<2x32xf32>
    %32 = vector.extract_strided_slice %17 {offsets = [0, 96], sizes = [2, 32], strides = [1, 1]} : vector<2x128xf32> to vector<2x32xf32>
    %33 = arith.negf %32 : vector<2x32xf32>
    %34 = math.exp %33 : vector<2x32xf32>
    %cst_16 = arith.constant 1.000000e+00 : f32
    %35 = vector.broadcast %cst_16 : f32 to vector<2x32xf32>
    %36 = arith.addf %35, %34 : vector<2x32xf32>
    %37 = arith.divf %35, %36 : vector<2x32xf32>
    %38 = arith.mulf %29, %13 : vector<2x32xf32>
    %39 = arith.mulf %23, %31 : vector<2x32xf32>
    %40 = arith.addf %38, %39 : vector<2x32xf32>
    %41 = math.tanh %40 : vector<2x32xf32>
    %42 = arith.mulf %37, %41 : vector<2x32xf32>
    %43 = vector.extract_strided_slice %10 {offsets = [0, 6, 0], sizes = [2, 1, 128], strides = [1, 1, 1]} : vector<2x8x128xf32> to vector<2x1x128xf32>
    %44 = vector.shape_cast %43 : vector<2x1x128xf32> to vector<2x128xf32>
    %cst_17 = arith.constant dense<0.000000e+00> : vector<2x128xf32>
    %45 = tpu.matmul %42, %11, %cst_17 {dimension_numbers = #tpu.dot_dimension_numbers<[1], [0], [0], [1], [0, 0, 1, 1], [], []>, precision = #tpu.contract_precision<fp32>} : vector<2x32xf32>, vector<32x128xf32>, vector<2x128xf32> -> vector<2x128xf32>
    %46 = arith.addf %44, %45 : vector<2x128xf32>
    %47 = vector.extract_strided_slice %46 {offsets = [0, 0], sizes = [2, 32], strides = [1, 1]} : vector<2x128xf32> to vector<2x32xf32>
    %48 = arith.negf %47 : vector<2x32xf32>
    %49 = math.exp %48 : vector<2x32xf32>
    %cst_18 = arith.constant 1.000000e+00 : f32
    %50 = vector.broadcast %cst_18 : f32 to vector<2x32xf32>
    %51 = arith.addf %50, %49 : vector<2x32xf32>
    %52 = arith.divf %50, %51 : vector<2x32xf32>
    %53 = vector.extract_strided_slice %46 {offsets = [0, 32], sizes = [2, 32], strides = [1, 1]} : vector<2x128xf32> to vector<2x32xf32>
    %54 = arith.negf %53 : vector<2x32xf32>
    %55 = math.exp %54 : vector<2x32xf32>
    %cst_19 = arith.constant 1.000000e+00 : f32
    %56 = vector.broadcast %cst_19 : f32 to vector<2x32xf32>
    %57 = arith.addf %56, %55 : vector<2x32xf32>
    %58 = arith.divf %56, %57 : vector<2x32xf32>
    %59 = vector.extract_strided_slice %46 {offsets = [0, 64], sizes = [2, 32], strides = [1, 1]} : vector<2x128xf32> to vector<2x32xf32>
    %60 = math.tanh %59 : vector<2x32xf32>
    %61 = vector.extract_strided_slice %46 {offsets = [0, 96], sizes = [2, 32], strides = [1, 1]} : vector<2x128xf32> to vector<2x32xf32>
    %62 = arith.negf %61 : vector<2x32xf32>
    %63 = math.exp %62 : vector<2x32xf32>
    %cst_20 = arith.constant 1.000000e+00 : f32
    %64 = vector.broadcast %cst_20 : f32 to vector<2x32xf32>
    %65 = arith.addf %64, %63 : vector<2x32xf32>
    %66 = arith.divf %64, %65 : vector<2x32xf32>
    %67 = arith.mulf %58, %40 : vector<2x32xf32>
    %68 = arith.mulf %52, %60 : vector<2x32xf32>
    %69 = arith.addf %67, %68 : vector<2x32xf32>
    %70 = math.tanh %69 : vector<2x32xf32>
    %71 = arith.mulf %66, %70 : vector<2x32xf32>
    %72 = vector.extract_strided_slice %10 {offsets = [0, 5, 0], sizes = [2, 1, 128], strides = [1, 1, 1]} : vector<2x8x128xf32> to vector<2x1x128xf32>
    %73 = vector.shape_cast %72 : vector<2x1x128xf32> to vector<2x128xf32>
    %cst_21 = arith.constant dense<0.000000e+00> : vector<2x128xf32>
    %74 = tpu.matmul %71, %11, %cst_21 {dimension_numbers = #tpu.dot_dimension_numbers<[1], [0], [0], [1], [0, 0, 1, 1], [], []>, precision = #tpu.contract_precision<fp32>} : vector<2x32xf32>, vector<32x128xf32>, vector<2x128xf32> -> vector<2x128xf32>
    %75 = arith.addf %73, %74 : vector<2x128xf32>
    %76 = vector.extract_strided_slice %75 {offsets = [0, 0], sizes = [2, 32], strides = [1, 1]} : vector<2x128xf32> to vector<2x32xf32>
    %77 = arith.negf %76 : vector<2x32xf32>
    %78 = math.exp %77 : vector<2x32xf32>
    %cst_22 = arith.constant 1.000000e+00 : f32
    %79 = vector.broadcast %cst_22 : f32 to vector<2x32xf32>
    %80 = arith.addf %79, %78 : vector<2x32xf32>
    %81 = arith.divf %79, %80 : vector<2x32xf32>
    %82 = vector.extract_strided_slice %75 {offsets = [0, 32], sizes = [2, 32], strides = [1, 1]} : vector<2x128xf32> to vector<2x32xf32>
    %83 = arith.negf %82 : vector<2x32xf32>
    %84 = math.exp %83 : vector<2x32xf32>
    %cst_23 = arith.constant 1.000000e+00 : f32
    %85 = vector.broadcast %cst_23 : f32 to vector<2x32xf32>
    %86 = arith.addf %85, %84 : vector<2x32xf32>
    %87 = arith.divf %85, %86 : vector<2x32xf32>
    %88 = vector.extract_strided_slice %75 {offsets = [0, 64], sizes = [2, 32], strides = [1, 1]} : vector<2x128xf32> to vector<2x32xf32>
    %89 = math.tanh %88 : vector<2x32xf32>
    %90 = vector.extract_strided_slice %75 {offsets = [0, 96], sizes = [2, 32], strides = [1, 1]} : vector<2x128xf32> to vector<2x32xf32>
    %91 = arith.negf %90 : vector<2x32xf32>
    %92 = math.exp %91 : vector<2x32xf32>
    %cst_24 = arith.constant 1.000000e+00 : f32
    %93 = vector.broadcast %cst_24 : f32 to vector<2x32xf32>
    %94 = arith.addf %93, %92 : vector<2x32xf32>
    %95 = arith.divf %93, %94 : vector<2x32xf32>
    %96 = arith.mulf %87, %69 : vector<2x32xf32>
    %97 = arith.mulf %81, %89 : vector<2x32xf32>
    %98 = arith.addf %96, %97 : vector<2x32xf32>
    %99 = math.tanh %98 : vector<2x32xf32>
    %100 = arith.mulf %95, %99 : vector<2x32xf32>
    %101 = vector.extract_strided_slice %10 {offsets = [0, 4, 0], sizes = [2, 1, 128], strides = [1, 1, 1]} : vector<2x8x128xf32> to vector<2x1x128xf32>
    %102 = vector.shape_cast %101 : vector<2x1x128xf32> to vector<2x128xf32>
    %cst_25 = arith.constant dense<0.000000e+00> : vector<2x128xf32>
    %103 = tpu.matmul %100, %11, %cst_25 {dimension_numbers = #tpu.dot_dimension_numbers<[1], [0], [0], [1], [0, 0, 1, 1], [], []>, precision = #tpu.contract_precision<fp32>} : vector<2x32xf32>, vector<32x128xf32>, vector<2x128xf32> -> vector<2x128xf32>
    %104 = arith.addf %102, %103 : vector<2x128xf32>
    %105 = vector.extract_strided_slice %104 {offsets = [0, 0], sizes = [2, 32], strides = [1, 1]} : vector<2x128xf32> to vector<2x32xf32>
    %106 = arith.negf %105 : vector<2x32xf32>
    %107 = math.exp %106 : vector<2x32xf32>
    %cst_26 = arith.constant 1.000000e+00 : f32
    %108 = vector.broadcast %cst_26 : f32 to vector<2x32xf32>
    %109 = arith.addf %108, %107 : vector<2x32xf32>
    %110 = arith.divf %108, %109 : vector<2x32xf32>
    %111 = vector.extract_strided_slice %104 {offsets = [0, 32], sizes = [2, 32], strides = [1, 1]} : vector<2x128xf32> to vector<2x32xf32>
    %112 = arith.negf %111 : vector<2x32xf32>
    %113 = math.exp %112 : vector<2x32xf32>
    %cst_27 = arith.constant 1.000000e+00 : f32
    %114 = vector.broadcast %cst_27 : f32 to vector<2x32xf32>
    %115 = arith.addf %114, %113 : vector<2x32xf32>
    %116 = arith.divf %114, %115 : vector<2x32xf32>
    %117 = vector.extract_strided_slice %104 {offsets = [0, 64], sizes = [2, 32], strides = [1, 1]} : vector<2x128xf32> to vector<2x32xf32>
    %118 = math.tanh %117 : vector<2x32xf32>
    %119 = vector.extract_strided_slice %104 {offsets = [0, 96], sizes = [2, 32], strides = [1, 1]} : vector<2x128xf32> to vector<2x32xf32>
    %120 = arith.negf %119 : vector<2x32xf32>
    %121 = math.exp %120 : vector<2x32xf32>
    %cst_28 = arith.constant 1.000000e+00 : f32
    %122 = vector.broadcast %cst_28 : f32 to vector<2x32xf32>
    %123 = arith.addf %122, %121 : vector<2x32xf32>
    %124 = arith.divf %122, %123 : vector<2x32xf32>
    %125 = arith.mulf %116, %98 : vector<2x32xf32>
    %126 = arith.mulf %110, %118 : vector<2x32xf32>
    %127 = arith.addf %125, %126 : vector<2x32xf32>
    %128 = math.tanh %127 : vector<2x32xf32>
    %129 = arith.mulf %124, %128 : vector<2x32xf32>
    %130 = vector.extract_strided_slice %10 {offsets = [0, 3, 0], sizes = [2, 1, 128], strides = [1, 1, 1]} : vector<2x8x128xf32> to vector<2x1x128xf32>
    %131 = vector.shape_cast %130 : vector<2x1x128xf32> to vector<2x128xf32>
    %cst_29 = arith.constant dense<0.000000e+00> : vector<2x128xf32>
    %132 = tpu.matmul %129, %11, %cst_29 {dimension_numbers = #tpu.dot_dimension_numbers<[1], [0], [0], [1], [0, 0, 1, 1], [], []>, precision = #tpu.contract_precision<fp32>} : vector<2x32xf32>, vector<32x128xf32>, vector<2x128xf32> -> vector<2x128xf32>
    %133 = arith.addf %131, %132 : vector<2x128xf32>
    %134 = vector.extract_strided_slice %133 {offsets = [0, 0], sizes = [2, 32], strides = [1, 1]} : vector<2x128xf32> to vector<2x32xf32>
    %135 = arith.negf %134 : vector<2x32xf32>
    %136 = math.exp %135 : vector<2x32xf32>
    %cst_30 = arith.constant 1.000000e+00 : f32
    %137 = vector.broadcast %cst_30 : f32 to vector<2x32xf32>
    %138 = arith.addf %137, %136 : vector<2x32xf32>
    %139 = arith.divf %137, %138 : vector<2x32xf32>
    %140 = vector.extract_strided_slice %133 {offsets = [0, 32], sizes = [2, 32], strides = [1, 1]} : vector<2x128xf32> to vector<2x32xf32>
    %141 = arith.negf %140 : vector<2x32xf32>
    %142 = math.exp %141 : vector<2x32xf32>
    %cst_31 = arith.constant 1.000000e+00 : f32
    %143 = vector.broadcast %cst_31 : f32 to vector<2x32xf32>
    %144 = arith.addf %143, %142 : vector<2x32xf32>
    %145 = arith.divf %143, %144 : vector<2x32xf32>
    %146 = vector.extract_strided_slice %133 {offsets = [0, 64], sizes = [2, 32], strides = [1, 1]} : vector<2x128xf32> to vector<2x32xf32>
    %147 = math.tanh %146 : vector<2x32xf32>
    %148 = vector.extract_strided_slice %133 {offsets = [0, 96], sizes = [2, 32], strides = [1, 1]} : vector<2x128xf32> to vector<2x32xf32>
    %149 = arith.negf %148 : vector<2x32xf32>
    %150 = math.exp %149 : vector<2x32xf32>
    %cst_32 = arith.constant 1.000000e+00 : f32
    %151 = vector.broadcast %cst_32 : f32 to vector<2x32xf32>
    %152 = arith.addf %151, %150 : vector<2x32xf32>
    %153 = arith.divf %151, %152 : vector<2x32xf32>
    %154 = arith.mulf %145, %127 : vector<2x32xf32>
    %155 = arith.mulf %139, %147 : vector<2x32xf32>
    %156 = arith.addf %154, %155 : vector<2x32xf32>
    %157 = math.tanh %156 : vector<2x32xf32>
    %158 = arith.mulf %153, %157 : vector<2x32xf32>
    %159 = vector.extract_strided_slice %10 {offsets = [0, 2, 0], sizes = [2, 1, 128], strides = [1, 1, 1]} : vector<2x8x128xf32> to vector<2x1x128xf32>
    %160 = vector.shape_cast %159 : vector<2x1x128xf32> to vector<2x128xf32>
    %cst_33 = arith.constant dense<0.000000e+00> : vector<2x128xf32>
    %161 = tpu.matmul %158, %11, %cst_33 {dimension_numbers = #tpu.dot_dimension_numbers<[1], [0], [0], [1], [0, 0, 1, 1], [], []>, precision = #tpu.contract_precision<fp32>} : vector<2x32xf32>, vector<32x128xf32>, vector<2x128xf32> -> vector<2x128xf32>
    %162 = arith.addf %160, %161 : vector<2x128xf32>
    %163 = vector.extract_strided_slice %162 {offsets = [0, 0], sizes = [2, 32], strides = [1, 1]} : vector<2x128xf32> to vector<2x32xf32>
    %164 = arith.negf %163 : vector<2x32xf32>
    %165 = math.exp %164 : vector<2x32xf32>
    %cst_34 = arith.constant 1.000000e+00 : f32
    %166 = vector.broadcast %cst_34 : f32 to vector<2x32xf32>
    %167 = arith.addf %166, %165 : vector<2x32xf32>
    %168 = arith.divf %166, %167 : vector<2x32xf32>
    %169 = vector.extract_strided_slice %162 {offsets = [0, 32], sizes = [2, 32], strides = [1, 1]} : vector<2x128xf32> to vector<2x32xf32>
    %170 = arith.negf %169 : vector<2x32xf32>
    %171 = math.exp %170 : vector<2x32xf32>
    %cst_35 = arith.constant 1.000000e+00 : f32
    %172 = vector.broadcast %cst_35 : f32 to vector<2x32xf32>
    %173 = arith.addf %172, %171 : vector<2x32xf32>
    %174 = arith.divf %172, %173 : vector<2x32xf32>
    %175 = vector.extract_strided_slice %162 {offsets = [0, 64], sizes = [2, 32], strides = [1, 1]} : vector<2x128xf32> to vector<2x32xf32>
    %176 = math.tanh %175 : vector<2x32xf32>
    %177 = vector.extract_strided_slice %162 {offsets = [0, 96], sizes = [2, 32], strides = [1, 1]} : vector<2x128xf32> to vector<2x32xf32>
    %178 = arith.negf %177 : vector<2x32xf32>
    %179 = math.exp %178 : vector<2x32xf32>
    %cst_36 = arith.constant 1.000000e+00 : f32
    %180 = vector.broadcast %cst_36 : f32 to vector<2x32xf32>
    %181 = arith.addf %180, %179 : vector<2x32xf32>
    %182 = arith.divf %180, %181 : vector<2x32xf32>
    %183 = arith.mulf %174, %156 : vector<2x32xf32>
    %184 = arith.mulf %168, %176 : vector<2x32xf32>
    %185 = arith.addf %183, %184 : vector<2x32xf32>
    %186 = math.tanh %185 : vector<2x32xf32>
    %187 = arith.mulf %182, %186 : vector<2x32xf32>
    %188 = vector.extract_strided_slice %10 {offsets = [0, 1, 0], sizes = [2, 1, 128], strides = [1, 1, 1]} : vector<2x8x128xf32> to vector<2x1x128xf32>
    %189 = vector.shape_cast %188 : vector<2x1x128xf32> to vector<2x128xf32>
    %cst_37 = arith.constant dense<0.000000e+00> : vector<2x128xf32>
    %190 = tpu.matmul %187, %11, %cst_37 {dimension_numbers = #tpu.dot_dimension_numbers<[1], [0], [0], [1], [0, 0, 1, 1], [], []>, precision = #tpu.contract_precision<fp32>} : vector<2x32xf32>, vector<32x128xf32>, vector<2x128xf32> -> vector<2x128xf32>
    %191 = arith.addf %189, %190 : vector<2x128xf32>
    %192 = vector.extract_strided_slice %191 {offsets = [0, 0], sizes = [2, 32], strides = [1, 1]} : vector<2x128xf32> to vector<2x32xf32>
    %193 = arith.negf %192 : vector<2x32xf32>
    %194 = math.exp %193 : vector<2x32xf32>
    %cst_38 = arith.constant 1.000000e+00 : f32
    %195 = vector.broadcast %cst_38 : f32 to vector<2x32xf32>
    %196 = arith.addf %195, %194 : vector<2x32xf32>
    %197 = arith.divf %195, %196 : vector<2x32xf32>
    %198 = vector.extract_strided_slice %191 {offsets = [0, 32], sizes = [2, 32], strides = [1, 1]} : vector<2x128xf32> to vector<2x32xf32>
    %199 = arith.negf %198 : vector<2x32xf32>
    %200 = math.exp %199 : vector<2x32xf32>
    %cst_39 = arith.constant 1.000000e+00 : f32
    %201 = vector.broadcast %cst_39 : f32 to vector<2x32xf32>
    %202 = arith.addf %201, %200 : vector<2x32xf32>
    %203 = arith.divf %201, %202 : vector<2x32xf32>
    %204 = vector.extract_strided_slice %191 {offsets = [0, 64], sizes = [2, 32], strides = [1, 1]} : vector<2x128xf32> to vector<2x32xf32>
    %205 = math.tanh %204 : vector<2x32xf32>
    %206 = vector.extract_strided_slice %191 {offsets = [0, 96], sizes = [2, 32], strides = [1, 1]} : vector<2x128xf32> to vector<2x32xf32>
    %207 = arith.negf %206 : vector<2x32xf32>
    %208 = math.exp %207 : vector<2x32xf32>
    %cst_40 = arith.constant 1.000000e+00 : f32
    %209 = vector.broadcast %cst_40 : f32 to vector<2x32xf32>
    %210 = arith.addf %209, %208 : vector<2x32xf32>
    %211 = arith.divf %209, %210 : vector<2x32xf32>
    %212 = arith.mulf %203, %185 : vector<2x32xf32>
    %213 = arith.mulf %197, %205 : vector<2x32xf32>
    %214 = arith.addf %212, %213 : vector<2x32xf32>
    %215 = math.tanh %214 : vector<2x32xf32>
    %216 = arith.mulf %211, %215 : vector<2x32xf32>
    %217 = vector.extract_strided_slice %10 {offsets = [0, 0, 0], sizes = [2, 1, 128], strides = [1, 1, 1]} : vector<2x8x128xf32> to vector<2x1x128xf32>
    %218 = vector.shape_cast %217 : vector<2x1x128xf32> to vector<2x128xf32>
    %cst_41 = arith.constant dense<0.000000e+00> : vector<2x128xf32>
    %219 = tpu.matmul %216, %11, %cst_41 {dimension_numbers = #tpu.dot_dimension_numbers<[1], [0], [0], [1], [0, 0, 1, 1], [], []>, precision = #tpu.contract_precision<fp32>} : vector<2x32xf32>, vector<32x128xf32>, vector<2x128xf32> -> vector<2x128xf32>
    %220 = arith.addf %218, %219 : vector<2x128xf32>
    %221 = vector.extract_strided_slice %220 {offsets = [0, 0], sizes = [2, 32], strides = [1, 1]} : vector<2x128xf32> to vector<2x32xf32>
    %222 = arith.negf %221 : vector<2x32xf32>
    %223 = math.exp %222 : vector<2x32xf32>
    %cst_42 = arith.constant 1.000000e+00 : f32
    %224 = vector.broadcast %cst_42 : f32 to vector<2x32xf32>
    %225 = arith.addf %224, %223 : vector<2x32xf32>
    %226 = arith.divf %224, %225 : vector<2x32xf32>
    %227 = vector.extract_strided_slice %220 {offsets = [0, 32], sizes = [2, 32], strides = [1, 1]} : vector<2x128xf32> to vector<2x32xf32>
    %228 = arith.negf %227 : vector<2x32xf32>
    %229 = math.exp %228 : vector<2x32xf32>
    %cst_43 = arith.constant 1.000000e+00 : f32
    %230 = vector.broadcast %cst_43 : f32 to vector<2x32xf32>
    %231 = arith.addf %230, %229 : vector<2x32xf32>
    %232 = arith.divf %230, %231 : vector<2x32xf32>
    %233 = vector.extract_strided_slice %220 {offsets = [0, 64], sizes = [2, 32], strides = [1, 1]} : vector<2x128xf32> to vector<2x32xf32>
    %234 = math.tanh %233 : vector<2x32xf32>
    %235 = vector.extract_strided_slice %220 {offsets = [0, 96], sizes = [2, 32], strides = [1, 1]} : vector<2x128xf32> to vector<2x32xf32>
    %236 = arith.negf %235 : vector<2x32xf32>
    %237 = math.exp %236 : vector<2x32xf32>
    %cst_44 = arith.constant 1.000000e+00 : f32
    %238 = vector.broadcast %cst_44 : f32 to vector<2x32xf32>
    %239 = arith.addf %238, %237 : vector<2x32xf32>
    %240 = arith.divf %238, %239 : vector<2x32xf32>
    %241 = arith.mulf %232, %214 : vector<2x32xf32>
    %242 = arith.mulf %226, %234 : vector<2x32xf32>
    %243 = arith.addf %241, %242 : vector<2x32xf32>
    %244 = math.tanh %243 : vector<2x32xf32>
    %245 = arith.mulf %240, %244 : vector<2x32xf32>
    %c0_45 = arith.constant 0 : index
    %c0_46 = arith.constant 0 : index
    %246 = vector.load %arg7[%c0_45, %c0_46] : memref<2x32xf32, #tpu.memory_space<vmem>>, vector<2x32xf32>
    tpu.vector_store %arg7[%c0_45, %c0_46], %245 {strides = array<i32>} : memref<2x32xf32, #tpu.memory_space<vmem>>, vector<2x32xf32>,
    %c0_47 = arith.constant 0 : index
    %c0_48 = arith.constant 0 : index
    %247 = vector.load %arg8[%c0_47, %c0_48] : memref<2x32xf32, #tpu.memory_space<vmem>>, vector<2x32xf32>
    tpu.vector_store %arg8[%c0_47, %c0_48], %243 {strides = array<i32>} : memref<2x32xf32, #tpu.memory_space<vmem>>, vector<2x32xf32>,
    %c0_49 = arith.constant 0 : index
    %c0_50 = arith.constant 0 : index
    %248 = vector.load %arg6[%c0_49, %c0_50] : memref<2x32xf32, #tpu.memory_space<vmem>>, vector<2x32xf32>
    tpu.vector_store %arg6[%c0_49, %c0_50], %245 {strides = array<i32>} : memref<2x32xf32, #tpu.memory_space<vmem>>, vector<2x32xf32>,
    return
  }
  func.func @transform_0(%arg0: i32, %arg1: i32) -> (i32, i32, i32) {
    %c1_i32 = arith.constant 1 : i32
    %0 = arith.subi %c1_i32, %arg1 : i32
    %c0_i32 = arith.constant 0 : i32
    %c0_i32_0 = arith.constant 0 : i32
    return %arg0, %0, %c0_i32 : i32, i32, i32
  }
  func.func @transform_1(%arg0: i32, %arg1: i32) -> (i32, i32) {
    %c0_i32 = arith.constant 0 : i32
    %c0_i32_0 = arith.constant 0 : i32
    %c0_i32_1 = arith.constant 0 : i32
    return %c0_i32, %c0_i32_0 : i32, i32
  }
  func.func @transform_2(%arg0: i32, %arg1: i32) -> (i32, i32) {
    %c0_i32 = arith.constant 0 : i32
    %c0_i32_0 = arith.constant 0 : i32
    %c0_i32_1 = arith.constant 0 : i32
    return %c0_i32, %c0_i32_0 : i32, i32
  }
  func.func @transform_3(%arg0: i32, %arg1: i32) -> (i32, i32) {
    %c0_i32 = arith.constant 0 : i32
    %c0_i32_0 = arith.constant 0 : i32
    %c0_i32_1 = arith.constant 0 : i32
    return %c0_i32, %c0_i32_0 : i32, i32
  }
  func.func @transform_4(%arg0: i32, %arg1: i32) -> (i32, i32) {
    %c0_i32 = arith.constant 0 : i32
    %c0_i32_0 = arith.constant 0 : i32
    return %arg0, %c0_i32 : i32, i32
  }
}

</mosaic_0001>

<llo_original>
// kernel: tpu_custom_call.1
$region0: #{tpu_custom_call.1}
  #allocation0 [shape = 'u32[]', space=smem, size = 0x4, offset = 0x4, fixed_abs, tag = 'smem constant byte address 0x4 - core index']
  #allocation1 [shape = 'u32[72,128]{1,0:T(1,128)}', space=vmem, size = 0x9000, scoped, tag = 'internal scratch']
  #allocation2 [shape = 'f32[2,32]{1,0:T(2,128)}', space=vmem, size = 0x400, scoped, tag = 'scratch operand']
  #allocation3 [shape = 'f32[2,32]{1,0:T(2,128)}', space=vmem, size = 0x400, scoped, tag = 'scratch operand']
  %s0 = inlined_call_operand.hbm [shape: f32[2,16,32], index: 0, kind: input, shape index: {}]
  %s1 = inlined_call_operand.hbm [shape: f32[32,128], index: 1, kind: input, shape index: {}]
  %s2 = inlined_call_operand.hbm [shape: f32[32,128], index: 2, kind: input, shape index: {}]
  %s3 = inlined_call_operand.vmem [shape: f32[1,128], index: 3, kind: input, shape index: {}]
  %s4 = inlined_call_operand.hbm [shape: f32[2,32], index: 4, kind: output, shape index: {}]
  %s5 = sld [smem:[#allocation0]]
  $region65: #{tpu_custom_call.1} parent=0
    _
  %s7 = ssub.s32 1, %s5
  %s8 = scalar_select 0, %s7, %s5
  $region1: #{tpu_custom_call.1} parent=0
    #allocation4 [shape = 'u8[16384]{0}', space=vmem, size = 0x4000, scoped, tag = 'input window, operand 0']
    #allocation5 [shape = 's32[2]{0}', space=sflag, size = 0x8, scoped, tag = 'scoped memory for tpu_custom_call.1']
    #allocation6 [shape = 's32[2]{0}', space=sflag, size = 0x8, scoped, tag = 'scoped memory for tpu_custom_call.1']
    #allocation7 [shape = 'u8[16384]{0}', space=vmem, size = 0x4000, scoped, tag = 'input window, operand 1, single buffered']
    #allocation8 [shape = 's32[1]{0}', space=sflag, size = 0x4, scoped, tag = 'scoped memory for tpu_custom_call.1']
    #allocation9 [shape = 'u8[16384]{0}', space=vmem, size = 0x4000, scoped, tag = 'input window, operand 2, single buffered']
    #allocation10 [shape = 'u8[1024]{0}', space=vmem, size = 0x400, scoped, tag = 'output window, operand 0, single buffered']
    %9 = vsyncpa [#allocation5], 0
    %s10 = scalar_lea.sflag [#allocation5], 1
    %11 = vsyncpa %s10, 0
    %12 = vsyncpa [#allocation8], 0
    %13 = vsyncpa [#allocation6], 0
    loop: start=0, step=1, limit=4
    $region2: #{tpu_custom_call.1} parent=1 // loop_pre_header
      _
    $region3: #{tpu_custom_call.1} parent=1 // loop_header
      %s15 = sphi 0, %s19
      %p16 = scmp.ge.s32.totalorder %s15, 4
      %s22 = sphi 0, %s34
      %s23 = sphi 0, %s30
      %s24 = sphi 0, %s22
      %s25 = sphi 0, %s23
      %s26 = sphi 0, %s24
      %s27 = sphi 0, %s25
      %s41 = sphi 0, %s43
      %s44 = sphi 0, %s41
      %s45 = sphi 0, %s44
      %s61 = sphi 0, %s45
      %s65 = sphi 0, %s65
      %s67 = sphi 0, %s65
      %s68 = sphi 0, %s67
      %s82 = sphi 0, %s68
      %s86 = sphi 0, %s86
      %s88 = sphi 0, %s86
      %s89 = sphi 0, %s88
      %s103 = sphi 0, %s89
      %s107 = sphi 0, %s107
      %s109 = sphi 0, %s107
      %s110 = sphi 0, %s109
      %s124 = sphi 0, %s110
      %s130 = sphi 0, %s132
      %s133 = sphi 0, %s130
      %s134 = sphi 0, %s133
      %s150 = sphi 0, %s134
    $region4: #{tpu_custom_call.1} parent=1 // loop_header_branch
      %18 = sbr.rel (%p16) target = $region8
    $region5: #{tpu_custom_call.1} parent=1 // loop_body
      %s20 = ssub.s32 %s15, 1
      %s21 = ssub.s32 %s15, 2
      %s28 = sadd.s32 1, %s23
      %p29 = scmp.ge.s32.totalorder %s28, 2
      %s30 = scalar_select %p29, 0, %s28
      %s31 = sadd.s32 1, %s22
      %s32 = scalar_select %p29, %s31, %s22
      %p33 = scmp.ge.s32.totalorder %s32, 1
      %s34 = scalar_select %p33, 0, %s32
      %s35 = ssub.s32 1, %s23
      %s36 = ssub.s32 1, %s30
      %s37 = ssub.s32 %s22, %s34
      %s38 = ssub.s32 %s35, %s36
      %s39 = sor.u32 %s37, %s38
      %p40 = scmp.eq.s32.totalorder %s39, 0
      %s42 = sadd.s32 %s41, 1
      %s43 = scalar_select %p40, %s41, %s42
      %p46 = pneg %p40
      %p47 = scmp.eq.s32.totalorder %s15, 1
      %p48 = por %p46, %p47
      %p49 = scmp.ne.s32.totalorder %s41, %s44
      %p50 = scmp.eq.s32.totalorder %s15, 0
      %p51 = por %p49, %p50
      %p52 = scmp.ne.s32.totalorder %s41, %s44
      %p53 = scmp.eq.s32.totalorder %s20, 1
      %p54 = por %p52, %p53
      %p55 = scmp.ne.s32.totalorder %s44, %s45
      %p56 = scmp.eq.s32.totalorder %s20, 0
      %p57 = por %p55, %p56
      %p58 = scmp.ne.s32.totalorder %s44, %s45
      %p59 = scmp.eq.s32.totalorder %s21, 1
      %p60 = por %p58, %p59
      %p62 = scmp.ne.s32.totalorder %s45, %s61
      %p63 = scmp.eq.s32.totalorder %s21, 0
      %p64 = por %p62, %p63
      %s66 = sadd.s32 %s65, 1
      %p69 = scmp.eq.s32.totalorder %s15, 1
      %p70 = scmp.ne.s32.totalorder %s65, %s67
      %p71 = scmp.eq.s32.totalorder %s15, 0
      %p72 = por %p70, %p71
      %p73 = scmp.ne.s32.totalorder %s65, %s67
      %p74 = scmp.eq.s32.totalorder %s20, 1
      %p75 = por %p73, %p74
      %p76 = scmp.ne.s32.totalorder %s67, %s68
      %p77 = scmp.eq.s32.totalorder %s20, 0
      %p78 = por %p76, %p77
      %p79 = scmp.ne.s32.totalorder %s67, %s68
      %p80 = scmp.eq.s32.totalorder %s21, 1
      %p81 = por %p79, %p80
      %p83 = scmp.ne.s32.totalorder %s68, %s82
      %p84 = scmp.eq.s32.totalorder %s21, 0
      %p85 = por %p83, %p84
      %s87 = sadd.s32 %s86, 1
      %p90 = scmp.eq.s32.totalorder %s15, 1
      %p91 = scmp.ne.s32.totalorder %s86, %s88
      %p92 = scmp.eq.s32.totalorder %s15, 0
      %p93 = por %p91, %p92
      %p94 = scmp.ne.s32.totalorder %s86, %s88
      %p95 = scmp.eq.s32.totalorder %s20, 1
      %p96 = por %p94, %p95
      %p97 = scmp.ne.s32.totalorder %s88, %s89
      %p98 = scmp.eq.s32.totalorder %s20, 0
      %p99 = por %p97, %p98
      %p100 = scmp.ne.s32.totalorder %s88, %s89
      %p101 = scmp.eq.s32.totalorder %s21, 1
      %p102 = por %p100, %p101
      %p104 = scmp.ne.s32.totalorder %s89, %s103
      %p105 = scmp.eq.s32.totalorder %s21, 0
      %p106 = por %p104, %p105
      %s108 = sadd.s32 %s107, 1
      %p111 = scmp.eq.s32.totalorder %s15, 1
      %p112 = scmp.ne.s32.totalorder %s107, %s109
      %p113 = scmp.eq.s32.totalorder %s15, 0
      %p114 = por %p112, %p113
      %p115 = scmp.ne.s32.totalorder %s107, %s109
      %p116 = scmp.eq.s32.totalorder %s20, 1
      %p117 = por %p115, %p116
      %p118 = scmp.ne.s32.totalorder %s109, %s110
      %p119 = scmp.eq.s32.totalorder %s20, 0
      %p120 = por %p118, %p119
      %p121 = scmp.ne.s32.totalorder %s109, %s110
      %p122 = scmp.eq.s32.totalorder %s21, 1
      %p123 = por %p121, %p122
      %p125 = scmp.ne.s32.totalorder %s110, %s124
      %p126 = scmp.eq.s32.totalorder %s21, 0
      %p127 = por %p125, %p126
      %s128 = ssub.s32 %s22, %s34
      %p129 = scmp.eq.s32.totalorder %s128, 0
      %s131 = sadd.s32 %s130, 1
      %s132 = scalar_select %p129, %s130, %s131
      %p135 = pneg %p129
      %p136 = scmp.eq.s32.totalorder %s15, 1
      %p137 = por %p135, %p136
      %p138 = scmp.ne.s32.totalorder %s130, %s133
      %p139 = scmp.eq.s32.totalorder %s15, 0
      %p140 = por %p138, %p139
      %p141 = scmp.ne.s32.totalorder %s130, %s133
      %p142 = scmp.eq.s32.totalorder %s20, 1
      %p143 = por %p141, %p142
      %p144 = scmp.ne.s32.totalorder %s133, %s134
      %p145 = scmp.eq.s32.totalorder %s20, 0
      %p146 = por %p144, %p145
      %p147 = scmp.ne.s32.totalorder %s133, %s134
      %p148 = scmp.eq.s32.totalorder %s21, 1
      %p149 = por %p147, %p148
      %p151 = scmp.ne.s32.totalorder %s134, %s150
      %p152 = scmp.eq.s32.totalorder %s21, 0
      %p153 = por %p151, %p152
      %p154 = scmp.le.s32.totalorder 1, %s15
      %p155 = scmp.lt.s32.totalorder %s15, 3
      %p156 = pnand %p154, %p155
      %p157 = pneg %p156
      // Predicated region
      $region9: #{tpu_custom_call.1} parent=5 // pred_check
        _
      $region10: #{tpu_custom_call.1} parent=5 // pred_check_branch
        %159 = sbr.rel (%p156) target = $region12
      $region11: #{tpu_custom_call.1} parent=5 // pred_region
        %s160 = ssub.s32 %s15, 1
        // Predicated region
        $region13: #{tpu_custom_call.1} parent=11 // pred_check
          %p161 = pneg %p78
        $region14: #{tpu_custom_call.1} parent=11 // pred_check_branch
          %163 = sbr.rel (%p161) target = $region16
        $region15: #{tpu_custom_call.1} parent=11 // pred_region
          %165 = vsyncadd [#allocation8], 0
          %s166 = sshll.u32 %s1, 4
          %s167 = int_to_ptr.hbm [resolvable:$true] %s166
          %s168 = sshll.u32 [#allocation7], 4
          %s169 = int_to_ptr.vmem [resolvable:$true] %s168
          %174 = dma.hbm_to_vmem [thread:$0]  %s167, 512, %s169, [#allocation8], 128, 128, 8
        $region16: #{tpu_custom_call.1} parent=11 // pred_fallthru
          _
        // Predicated region
        $region17: #{tpu_custom_call.1} parent=11 // pred_check
          %p175 = pneg %p99
        $region18: #{tpu_custom_call.1} parent=11 // pred_check_branch
          %177 = sbr.rel (%p175) target = $region20
        $region19: #{tpu_custom_call.1} parent=11 // pred_region
          %179 = vsyncadd [#allocation8], 0
          %s180 = sshll.u32 %s2, 4
          %s181 = int_to_ptr.hbm [resolvable:$true] %s180
          %s182 = sshll.u32 [#allocation9], 4
          %s183 = int_to_ptr.vmem [resolvable:$true] %s182
          %188 = dma.hbm_to_vmem [thread:$0]  %s181, 512, %s183, [#allocation8], 128, 128, 8
        $region20: #{tpu_custom_call.1} parent=11 // pred_fallthru
          _
        // Predicated region
        $region21: #{tpu_custom_call.1} parent=11 // pred_check
          %p189 = pneg %p120
        $region22: #{tpu_custom_call.1} parent=11 // pred_check_branch
          %191 = sbr.rel (%p189) target = $region24
        $region23: #{tpu_custom_call.1} parent=11 // pred_region
          _
        $region24: #{tpu_custom_call.1} parent=11 // pred_fallthru
          _
      $region12: #{tpu_custom_call.1} parent=5 // pred_fallthru
        _
      %p192 = scmp.lt.s32.totalorder %s15, 2
      // Predicated region
      $region25: #{tpu_custom_call.1} parent=5 // pred_check
        %p193 = pneg %p192
      $region26: #{tpu_custom_call.1} parent=5 // pred_check_branch
        %195 = sbr.rel (%p193) target = $region28
      $region27: #{tpu_custom_call.1} parent=5 // pred_region
        // Predicated region
        $region29: #{tpu_custom_call.1} parent=27 // pred_check
          %p196 = pneg %p51
        $region30: #{tpu_custom_call.1} parent=27 // pred_check_branch
          %198 = sbr.rel (%p196) target = $region32
        $region31: #{tpu_custom_call.1} parent=27 // pred_region
          %s199 = sand.u32 %s41, 1
          %s200 = scalar_lea.sflag [#allocation5], %s199
          %s201 = sand.u32 %s41, 1
          %s202 = smul.addr %s201, 16
          %s203 = scalar_lea.vmem [#allocation4], %s202
          %s204 = ssub.s32 1, %s23
          %s205 = smul.u32 2, %s22
          %207 = vsyncadd %s200, 0
          %s208 = smul.addr %s205, 2
          %s209 = sadd.s32 %s204, %s208
          %s210 = smul.addr %s209, 8
          %s211 = scalar_lea.hbm %s0, %s210
          %s212 = sshll.u32 %s211, 4
          %s213 = int_to_ptr.hbm [resolvable:$true] %s212
          %s214 = sshll.u32 %s203, 4
          %s215 = int_to_ptr.vmem [resolvable:$true] %s214
          %220 = dma.hbm_to_vmem [thread:$0]  %s213, 256, %s215, %s200, 256, 128, 8
        $region32: #{tpu_custom_call.1} parent=27 // pred_fallthru
          _
      $region28: #{tpu_custom_call.1} parent=5 // pred_fallthru
        _
      %p221 = scmp.le.s32.totalorder 1, %s15
      %p222 = scmp.lt.s32.totalorder %s15, 3
      %p223 = pnand %p221, %p222
      %p224 = pneg %p223
      // Predicated region
      $region33: #{tpu_custom_call.1} parent=5 // pred_check
        _
      $region34: #{tpu_custom_call.1} parent=5 // pred_check_branch
        %226 = sbr.rel (%p223) target = $region36
      $region35: #{tpu_custom_call.1} parent=5 // pred_region
        %s227 = ssub.s32 %s15, 1
        %s228 = sand.u32 %s44, 1
        %s229 = scalar_lea.sflag [#allocation5], %s228
        %s230 = sand.u32 %s44, 1
        %s231 = smul.addr %s230, 16
        %s232 = scalar_lea.vmem [#allocation4], %s231
        // Predicated region
        $region37: #{tpu_custom_call.1} parent=35 // pred_check
          %p233 = pneg %p57
        $region38: #{tpu_custom_call.1} parent=35 // pred_check_branch
          %235 = sbr.rel (%p233) target = $region40
        $region39: #{tpu_custom_call.1} parent=35 // pred_region
          %237 = dma.done %s229, 256
        $region40: #{tpu_custom_call.1} parent=35 // pred_fallthru
          _
        // Predicated region
        $region41: #{tpu_custom_call.1} parent=35 // pred_check
          %p238 = pneg %p78
        $region42: #{tpu_custom_call.1} parent=35 // pred_check_branch
          %240 = sbr.rel (%p238) target = $region44
        $region43: #{tpu_custom_call.1} parent=35 // pred_region
          %242 = dma.done [#allocation8], 512
        $region44: #{tpu_custom_call.1} parent=35 // pred_fallthru
          _
        // Predicated region
        $region45: #{tpu_custom_call.1} parent=35 // pred_check
          %p243 = pneg %p99
        $region46: #{tpu_custom_call.1} parent=35 // pred_check_branch
          %245 = sbr.rel (%p243) target = $region48
        $region47: #{tpu_custom_call.1} parent=35 // pred_region
          %247 = dma.done [#allocation8], 512
        $region48: #{tpu_custom_call.1} parent=35 // pred_fallthru
          _
        %s248 = sand.u32 %s44, 1
        %s249 = scalar_lea.sflag [#allocation5], %s248
        %s250 = sand.u32 %s44, 1
        %s251 = smul.addr %s250, 16
        %s252 = scalar_lea.vmem [#allocation4], %s251
        %p253 = pneg %p57
        %p254 = pneg %p54
        %p255 = pneg %p78
        %p256 = pneg %p75
        %p257 = pneg %p99
        %p258 = pneg %p96
        %p259 = pneg %p120
        %p260 = pneg %p117
        %p261 = pneg %p146
        %p262 = pneg %p143
        %s263 = ssub.s32 1, %s25
        %s264 = smul.u32 2, %s24
        %p265 = scmp.eq.s32.totalorder %s25, 0
        // Predicated region
        $region49: #{tpu_custom_call.1} parent=35 // pred_check
          %p266 = pneg %p265
        $region50: #{tpu_custom_call.1} parent=35 // pred_check_branch
          %268 = sbr.rel (%p266) target = $region52
        $region51: #{tpu_custom_call.1} parent=35 // pred_region
          %vm269 = vcmask 254976
          %270 = vst.msk [vmem:[#allocation2] sm:$0x3] %vm269, 0.0
          %271 = vst.msk [vmem:[#allocation3] sm:$0x3] %vm269, 0.0
        $region52: #{tpu_custom_call.1} parent=35 // pred_fallthru
          _
        %v272 = vld [vmem:[%s232] sm:$0xff]
        %v273 = vld [vmem:[%s232 + $0x8] sm:$0xff]
        %v274 = vld [vmem:[#allocation7] sm:$0xff]
        %v275 = vld [vmem:[#allocation7 + $0x8] sm:$0xff]
        %v276 = vld [vmem:[#allocation7 + $0x10] sm:$0xff]
        %v277 = vld [vmem:[#allocation7 + $0x18] sm:$0xff]
        %v278 = vld [vmem:[%s3] sm:$0x1]
        %v280 = vperm.slane %v278, 0
        %vm282 = vcmask 261120
        %v284 = vsel %vm282, %v272, 0
        %v287 = vsel %vm282, %v273, 0
        %289 = vmatpush.msra.mxu0 0.0
        %290 = vmatpush.msra.mxu0 0.0
        %291 = vmatpush.msra.mxu0 0.0
        %292 = vmatpush.msra.mxu0 0.0
        %293 = vmatpush.msra.mxu0 0.0
        %294 = vmatpush.msra.mxu0 0.0
        %295 = vmatpush.msra.mxu0 0.0
        %296 = vmatpush.msra.mxu0 0.0
        %297 = vmatpush.msra.mxu0 0.0
        %298 = vmatpush.msra.mxu0 0.0
        %299 = vmatpush.msra.mxu0 0.0
        %300 = vmatpush.msra.mxu0 0.0
        %v301 = vand.u32 %v277, 4294901760
        %302 = vmatpush.msra.mxu0 %v301
        %v303 = vand.u32 %v276, 4294901760
        %304 = vmatpush.msra.mxu0 %v303
        %v305 = vand.u32 %v275, 4294901760
        %306 = vmatpush.msra.mxu0 %v305
        %v307 = vand.u32 %v274, 4294901760
        %308 = vmatpush.msra.mxu0 %v307
        %v309 = vand.u32 %v284, 4294901760
        %v310 = vsub.f32 %v284, %v309
        %v311 = vand.u32 %v310, 4294901760
        %v312 = vsub.f32 %v310, %v311
        %v313 = vand.u32 %v312, 4294901760
        %314 = vmatmul.f32.gmra.mxu0 %v313
        %v315 = vpop.f32.mrf.mxu0
        %v316 = vadd.f32 %v280, %v315
        %v317 = vand.u32 %v287, 4294901760
        %v318 = vsub.f32 %v287, %v317
        %v319 = vand.u32 %v318, 4294901760
        %v320 = vsub.f32 %v318, %v319
        %v321 = vand.u32 %v320, 4294901760
        %322 = vmatmul.f32.gmra.mxu0 %v321
        %v323 = vpop.f32.mrf.mxu0
        %v324 = vadd.f32 %v280, %v323
        %325 = vdwg.mxu0
        %326 = vmatpush.msra.mxu0 0.0
        %327 = vmatpush.msra.mxu0 0.0
        %328 = vmatpush.msra.mxu0 0.0
        %329 = vmatpush.msra.mxu0 0.0
        %330 = vmatpush.msra.mxu0 0.0
        %331 = vmatpush.msra.mxu0 0.0
        %332 = vmatpush.msra.mxu0 0.0
        %333 = vmatpush.msra.mxu0 0.0
        %334 = vmatpush.msra.mxu0 0.0
        %335 = vmatpush.msra.mxu0 0.0
        %336 = vmatpush.msra.mxu0 0.0
        %337 = vmatpush.msra.mxu0 0.0
        %v338 = vand.u32 %v277, 4294901760
        %v339 = vsub.f32 %v277, %v338
        %v340 = vand.u32 %v339, 4294901760
        %v341 = vsub.f32 %v339, %v340
        %v342 = vand.u32 %v341, 4294901760
        %343 = vmatpush.msra.mxu0 %v342
        %v344 = vand.u32 %v276, 4294901760
        %v345 = vsub.f32 %v276, %v344
        %v346 = vand.u32 %v345, 4294901760
        %v347 = vsub.f32 %v345, %v346
        %v348 = vand.u32 %v347, 4294901760
        %349 = vmatpush.msra.mxu0 %v348
        %v350 = vand.u32 %v275, 4294901760
        %v351 = vsub.f32 %v275, %v350
        %v352 = vand.u32 %v351, 4294901760
        %v353 = vsub.f32 %v351, %v352
        %v354 = vand.u32 %v353, 4294901760
        %355 = vmatpush.msra.mxu0 %v354
        %v356 = vand.u32 %v274, 4294901760
        %v357 = vsub.f32 %v274, %v356
        %v358 = vand.u32 %v357, 4294901760
        %v359 = vsub.f32 %v357, %v358
        %v360 = vand.u32 %v359, 4294901760
        %361 = vmatpush.msra.mxu0 %v360
        %v362 = vand.u32 %v284, 4294901760
        %363 = vmatmul.f32.gmra.mxu0 %v362
        %v364 = vpop.f32.mrf.mxu0
        %v365 = vadd.f32 %v316, %v364
        %v366 = vand.u32 %v287, 4294901760
        %367 = vmatmul.f32.gmra.mxu0 %v366
        %v368 = vpop.f32.mrf.mxu0
        %v369 = vadd.f32 %v324, %v368
        %370 = vdwg.mxu0
        %371 = vmatpush.msra.mxu0 0.0
        %372 = vmatpush.msra.mxu0 0.0
        %373 = vmatpush.msra.mxu0 0.0
        %374 = vmatpush.msra.mxu0 0.0
        %375 = vmatpush.msra.mxu0 0.0
        %376 = vmatpush.msra.mxu0 0.0
        %377 = vmatpush.msra.mxu0 0.0
        %378 = vmatpush.msra.mxu0 0.0
        %379 = vmatpush.msra.mxu0 0.0
        %380 = vmatpush.msra.mxu0 0.0
        %381 = vmatpush.msra.mxu0 0.0
        %382 = vmatpush.msra.mxu0 0.0
        %v383 = vand.u32 %v277, 4294901760
        %v384 = vsub.f32 %v277, %v383
        %385 = vmatpush.msra.mxu0 %v384
        %v386 = vand.u32 %v276, 4294901760
        %v387 = vsub.f32 %v276, %v386
        %388 = vmatpush.msra.mxu0 %v387
        %v389 = vand.u32 %v275, 4294901760
        %v390 = vsub.f32 %v275, %v389
        %391 = vmatpush.msra.mxu0 %v390
        %v392 = vand.u32 %v274, 4294901760
        %v393 = vsub.f32 %v274, %v392
        %394 = vmatpush.msra.mxu0 %v393
        %v395 = vand.u32 %v284, 4294901760
        %v396 = vsub.f32 %v284, %v395
        %397 = vmatmul.f32.gmra.mxu0 %v396
        %v398 = vpop.f32.mrf.mxu0
        %v399 = vadd.f32 %v365, %v398
        %v400 = vand.u32 %v287, 4294901760
        %v401 = vsub.f32 %v287, %v400
        %402 = vmatmul.f32.gmra.mxu0 %v401
        %v403 = vpop.f32.mrf.mxu0
        %v404 = vadd.f32 %v369, %v403
        %405 = vdwg.mxu0
        %406 = vmatpush.msra.mxu0 0.0
        %407 = vmatpush.msra.mxu0 0.0
        %408 = vmatpush.msra.mxu0 0.0
        %409 = vmatpush.msra.mxu0 0.0
        %410 = vmatpush.msra.mxu0 0.0
        %411 = vmatpush.msra.mxu0 0.0
        %412 = vmatpush.msra.mxu0 0.0
        %413 = vmatpush.msra.mxu0 0.0
        %414 = vmatpush.msra.mxu0 0.0
        %415 = vmatpush.msra.mxu0 0.0
        %416 = vmatpush.msra.mxu0 0.0
        %417 = vmatpush.msra.mxu0 0.0
        %v418 = vand.u32 %v277, 4294901760
        %419 = vmatpush.msra.mxu0 %v418
        %v420 = vand.u32 %v276, 4294901760
        %421 = vmatpush.msra.mxu0 %v420
        %v422 = vand.u32 %v275, 4294901760
        %423 = vmatpush.msra.mxu0 %v422
        %v424 = vand.u32 %v274, 4294901760
        %425 = vmatpush.msra.mxu0 %v424
        %v426 = vand.u32 %v284, 4294901760
        %v427 = vsub.f32 %v284, %v426
        %v428 = vand.u32 %v427, 4294901760
        %429 = vmatmul.f32.gmra.mxu0 %v428
        %v430 = vpop.f32.mrf.mxu0
        %v431 = vadd.f32 %v399, %v430
        %v432 = vand.u32 %v287, 4294901760
        %v433 = vsub.f32 %v287, %v432
        %v434 = vand.u32 %v433, 4294901760
        %435 = vmatmul.f32.gmra.mxu0 %v434
        %v436 = vpop.f32.mrf.mxu0
        %v437 = vadd.f32 %v404, %v436
        %438 = vdwg.mxu0
        %439 = vmatpush.msra.mxu0 0.0
        %440 = vmatpush.msra.mxu0 0.0
        %441 = vmatpush.msra.mxu0 0.0
        %442 = vmatpush.msra.mxu0 0.0
        %443 = vmatpush.msra.mxu0 0.0
        %444 = vmatpush.msra.mxu0 0.0
        %445 = vmatpush.msra.mxu0 0.0
        %446 = vmatpush.msra.mxu0 0.0
        %447 = vmatpush.msra.mxu0 0.0
        %448 = vmatpush.msra.mxu0 0.0
        %449 = vmatpush.msra.mxu0 0.0
        %450 = vmatpush.msra.mxu0 0.0
        %v451 = vand.u32 %v277, 4294901760
        %v452 = vsub.f32 %v277, %v451
        %v453 = vand.u32 %v452, 4294901760
        %454 = vmatpush.msra.mxu0 %v453
        %v455 = vand.u32 %v276, 4294901760
        %v456 = vsub.f32 %v276, %v455
        %v457 = vand.u32 %v456, 4294901760
        %458 = vmatpush.msra.mxu0 %v457
        %v459 = vand.u32 %v275, 4294901760
        %v460 = vsub.f32 %v275, %v459
        %v461 = vand.u32 %v460, 4294901760
        %462 = vmatpush.msra.mxu0 %v461
        %v463 = vand.u32 %v274, 4294901760
        %v464 = vsub.f32 %v274, %v463
        %v465 = vand.u32 %v464, 4294901760
        %466 = vmatpush.msra.mxu0 %v465
        %v467 = vand.u32 %v284, 4294901760
        %468 = vmatmul.f32.gmra.mxu0 %v467
        %v469 = vpop.f32.mrf.mxu0
        %v470 = vadd.f32 %v431, %v469
        %v471 = vand.u32 %v287, 4294901760
        %472 = vmatmul.f32.gmra.mxu0 %v471
        %v473 = vpop.f32.mrf.mxu0
        %v474 = vadd.f32 %v437, %v473
        %475 = vdwg.mxu0
        %476 = vmatpush.msra.mxu0 0.0
        %477 = vmatpush.msra.mxu0 0.0
        %478 = vmatpush.msra.mxu0 0.0
        %479 = vmatpush.msra.mxu0 0.0
        %480 = vmatpush.msra.mxu0 0.0
        %481 = vmatpush.msra.mxu0 0.0
        %482 = vmatpush.msra.mxu0 0.0
        %483 = vmatpush.msra.mxu0 0.0
        %484 = vmatpush.msra.mxu0 0.0
        %485 = vmatpush.msra.mxu0 0.0
        %486 = vmatpush.msra.mxu0 0.0
        %487 = vmatpush.msra.mxu0 0.0
        %v488 = vand.u32 %v277, 4294901760
        %489 = vmatpush.msra.mxu0 %v488
        %v490 = vand.u32 %v276, 4294901760
        %491 = vmatpush.msra.mxu0 %v490
        %v492 = vand.u32 %v275, 4294901760
        %493 = vmatpush.msra.mxu0 %v492
        %v494 = vand.u32 %v274, 4294901760
        %495 = vmatpush.msra.mxu0 %v494
        %v496 = vand.u32 %v284, 4294901760
        %497 = vmatmul.f32.gmra.mxu0 %v496
        %v498 = vpop.f32.mrf.mxu0
        %v499 = vadd.f32 %v470, %v498
        %v500 = vand.u32 %v287, 4294901760
        %501 = vmatmul.f32.gmra.mxu0 %v500
        %v502 = vpop.f32.mrf.mxu0
        %v503 = vadd.f32 %v474, %v502
        %504 = vdwg.mxu0
        %v505 = vld [vmem:[#allocation9] sm:$0xff]
        %v506 = vld [vmem:[#allocation9 + $0x8] sm:$0xff]
        %v507 = vld [vmem:[#allocation9 + $0x10] sm:$0xff]
        %v508 = vld [vmem:[#allocation9 + $0x18] sm:$0xff]
        %v509 = vld [vmem:[#allocation2] sm:$0x3]
        %v510 = vld [vmem:[#allocation3] sm:$0x3]
        %v512 = vsel %vm282, %v509, 0
        %514 = vmatpush.msra.mxu0 0.0
        %515 = vmatpush.msra.mxu0 0.0
        %516 = vmatpush.msra.mxu0 0.0
        %517 = vmatpush.msra.mxu0 0.0
        %518 = vmatpush.msra.mxu0 0.0
        %519 = vmatpush.msra.mxu0 0.0
        %520 = vmatpush.msra.mxu0 0.0
        %521 = vmatpush.msra.mxu0 0.0
        %522 = vmatpush.msra.mxu0 0.0
        %523 = vmatpush.msra.mxu0 0.0
        %524 = vmatpush.msra.mxu0 0.0
        %525 = vmatpush.msra.mxu0 0.0
        %v526 = vand.u32 %v508, 4294901760
        %527 = vmatpush.msra.mxu0 %v526
        %v528 = vand.u32 %v507, 4294901760
        %529 = vmatpush.msra.mxu0 %v528
        %v530 = vand.u32 %v506, 4294901760
        %531 = vmatpush.msra.mxu0 %v530
        %v532 = vand.u32 %v505, 4294901760
        %533 = vmatpush.msra.mxu0 %v532
        %v534 = vand.u32 %v512, 4294901760
        %v535 = vsub.f32 %v512, %v534
        %v536 = vand.u32 %v535, 4294901760
        %v537 = vsub.f32 %v535, %v536
        %v538 = vand.u32 %v537, 4294901760
        %539 = vmatmul.f32.gmra.mxu0 %v538
        %v540 = vpop.f32.mrf.mxu0
        %v541 = vadd.f32 0.0, %v540
        %542 = vdwg.mxu0
        %543 = vmatpush.msra.mxu0 0.0
        %544 = vmatpush.msra.mxu0 0.0
        %545 = vmatpush.msra.mxu0 0.0
        %546 = vmatpush.msra.mxu0 0.0
        %547 = vmatpush.msra.mxu0 0.0
        %548 = vmatpush.msra.mxu0 0.0
        %549 = vmatpush.msra.mxu0 0.0
        %550 = vmatpush.msra.mxu0 0.0
        %551 = vmatpush.msra.mxu0 0.0
        %552 = vmatpush.msra.mxu0 0.0
        %553 = vmatpush.msra.mxu0 0.0
        %554 = vmatpush.msra.mxu0 0.0
        %v555 = vand.u32 %v508, 4294901760
        %v556 = vsub.f32 %v508, %v555
        %v557 = vand.u32 %v556, 4294901760
        %v558 = vsub.f32 %v556, %v557
        %v559 = vand.u32 %v558, 4294901760
        %560 = vmatpush.msra.mxu0 %v559
        %v561 = vand.u32 %v507, 4294901760
        %v562 = vsub.f32 %v507, %v561
        %v563 = vand.u32 %v562, 4294901760
        %v564 = vsub.f32 %v562, %v563
        %v565 = vand.u32 %v564, 4294901760
        %566 = vmatpush.msra.mxu0 %v565
        %v567 = vand.u32 %v506, 4294901760
        %v568 = vsub.f32 %v506, %v567
        %v569 = vand.u32 %v568, 4294901760
        %v570 = vsub.f32 %v568, %v569
        %v571 = vand.u32 %v570, 4294901760
        %572 = vmatpush.msra.mxu0 %v571
        %v573 = vand.u32 %v505, 4294901760
        %v574 = vsub.f32 %v505, %v573
        %v575 = vand.u32 %v574, 4294901760
        %v576 = vsub.f32 %v574, %v575
        %v577 = vand.u32 %v576, 4294901760
        %578 = vmatpush.msra.mxu0 %v577
        %v579 = vand.u32 %v512, 4294901760
        %580 = vmatmul.f32.gmra.mxu0 %v579
        %v581 = vpop.f32.mrf.mxu0
        %v582 = vadd.f32 %v541, %v581
        %583 = vdwg.mxu0
        %584 = vmatpush.msra.mxu0 0.0
        %585 = vmatpush.msra.mxu0 0.0
        %586 = vmatpush.msra.mxu0 0.0
        %587 = vmatpush.msra.mxu0 0.0
        %588 = vmatpush.msra.mxu0 0.0
        %589 = vmatpush.msra.mxu0 0.0
        %590 = vmatpush.msra.mxu0 0.0
        %591 = vmatpush.msra.mxu0 0.0
        %592 = vmatpush.msra.mxu0 0.0
        %593 = vmatpush.msra.mxu0 0.0
        %594 = vmatpush.msra.mxu0 0.0
        %595 = vmatpush.msra.mxu0 0.0
        %v596 = vand.u32 %v508, 4294901760
        %v597 = vsub.f32 %v508, %v596
        %598 = vmatpush.msra.mxu0 %v597
        %v599 = vand.u32 %v507, 4294901760
        %v600 = vsub.f32 %v507, %v599
        %601 = vmatpush.msra.mxu0 %v600
        %v602 = vand.u32 %v506, 4294901760
        %v603 = vsub.f32 %v506, %v602
        %604 = vmatpush.msra.mxu0 %v603
        %v605 = vand.u32 %v505, 4294901760
        %v606 = vsub.f32 %v505, %v605
        %607 = vmatpush.msra.mxu0 %v606
        %v608 = vand.u32 %v512, 4294901760
        %v609 = vsub.f32 %v512, %v608
        %610 = vmatmul.f32.gmra.mxu0 %v609
        %v611 = vpop.f32.mrf.mxu0
        %v612 = vadd.f32 %v582, %v611
        %613 = vdwg.mxu0
        %614 = vmatpush.msra.mxu0 0.0
        %615 = vmatpush.msra.mxu0 0.0
        %616 = vmatpush.msra.mxu0 0.0
        %617 = vmatpush.msra.mxu0 0.0
        %618 = vmatpush.msra.mxu0 0.0
        %619 = vmatpush.msra.mxu0 0.0
        %620 = vmatpush.msra.mxu0 0.0
        %621 = vmatpush.msra.mxu0 0.0
        %622 = vmatpush.msra.mxu0 0.0
        %623 = vmatpush.msra.mxu0 0.0
        %624 = vmatpush.msra.mxu0 0.0
        %625 = vmatpush.msra.mxu0 0.0
        %v626 = vand.u32 %v508, 4294901760
        %627 = vmatpush.msra.mxu0 %v626
        %v628 = vand.u32 %v507, 4294901760
        %629 = vmatpush.msra.mxu0 %v628
        %v630 = vand.u32 %v506, 4294901760
        %631 = vmatpush.msra.mxu0 %v630
        %v632 = vand.u32 %v505, 4294901760
        %633 = vmatpush.msra.mxu0 %v632
        %v634 = vand.u32 %v512, 4294901760
        %v635 = vsub.f32 %v512, %v634
        %v636 = vand.u32 %v635, 4294901760
        %637 = vmatmul.f32.gmra.mxu0 %v636
        %v638 = vpop.f32.mrf.mxu0
        %v639 = vadd.f32 %v612, %v638
        %640 = vdwg.mxu0
        %641 = vmatpush.msra.mxu0 0.0
        %642 = vmatpush.msra.mxu0 0.0
        %643 = vmatpush.msra.mxu0 0.0
        %644 = vmatpush.msra.mxu0 0.0
        %645 = vmatpush.msra.mxu0 0.0
        %646 = vmatpush.msra.mxu0 0.0
        %647 = vmatpush.msra.mxu0 0.0
        %648 = vmatpush.msra.mxu0 0.0
        %649 = vmatpush.msra.mxu0 0.0
        %650 = vmatpush.msra.mxu0 0.0
        %651 = vmatpush.msra.mxu0 0.0
        %652 = vmatpush.msra.mxu0 0.0
        %v653 = vand.u32 %v508, 4294901760
        %v654 = vsub.f32 %v508, %v653
        %v655 = vand.u32 %v654, 4294901760
        %656 = vmatpush.msra.mxu0 %v655
        %v657 = vand.u32 %v507, 4294901760
        %v658 = vsub.f32 %v507, %v657
        %v659 = vand.u32 %v658, 4294901760
        %660 = vmatpush.msra.mxu0 %v659
        %v661 = vand.u32 %v506, 4294901760
        %v662 = vsub.f32 %v506, %v661
        %v663 = vand.u32 %v662, 4294901760
        %664 = vmatpush.msra.mxu0 %v663
        %v665 = vand.u32 %v505, 4294901760
        %v666 = vsub.f32 %v505, %v665
        %v667 = vand.u32 %v666, 4294901760
        %668 = vmatpush.msra.mxu0 %v667
        %v669 = vand.u32 %v512, 4294901760
        %670 = vmatmul.f32.gmra.mxu0 %v669
        %v671 = vpop.f32.mrf.mxu0
        %v672 = vadd.f32 %v639, %v671
        %673 = vdwg.mxu0
        %674 = vmatpush.msra.mxu0 0.0
        %675 = vmatpush.msra.mxu0 0.0
        %676 = vmatpush.msra.mxu0 0.0
        %677 = vmatpush.msra.mxu0 0.0
        %678 = vmatpush.msra.mxu0 0.0
        %679 = vmatpush.msra.mxu0 0.0
        %680 = vmatpush.msra.mxu0 0.0
        %681 = vmatpush.msra.mxu0 0.0
        %682 = vmatpush.msra.mxu0 0.0
        %683 = vmatpush.msra.mxu0 0.0
        %684 = vmatpush.msra.mxu0 0.0
        %685 = vmatpush.msra.mxu0 0.0
        %v686 = vand.u32 %v508, 4294901760
        %687 = vmatpush.msra.mxu0 %v686
        %v688 = vand.u32 %v507, 4294901760
        %689 = vmatpush.msra.mxu0 %v688
        %v690 = vand.u32 %v506, 4294901760
        %691 = vmatpush.msra.mxu0 %v690
        %v692 = vand.u32 %v505, 4294901760
        %693 = vmatpush.msra.mxu0 %v692
        %v694 = vand.u32 %v512, 4294901760
        %695 = vmatmul.f32.gmra.mxu0 %v694
        %v696 = vpop.f32.mrf.mxu0
        %v697 = vadd.f32 %v672, %v696
        %698 = vdwg.mxu0
        %v700 = vrot.slane %v697, 1
        %v701 = vrot.slane %v697, 2
        %v704 = vadd.f32 %v499, %v700
        %v705 = vadd.f32 %v503, %v701
        %v706 = vxor.u32 %v704, 2147483648
        %v707 = vxor.u32 %v705, 2147483648
        %v708 = vmul.f32 %v706, 1.442695
        %v709 = vpow.pop %v708
        %v710 = vmul.f32 %v707, 1.442695
        %v711 = vpow.pop %v710
        %v712 = vadd.f32 %v709, 1.0
        %v713 = vadd.f32 %v711, 1.0
        %v714 = vrcp.pop %v712
        %v715 = vmul.f32 %v712, %v714
        %v716 = vsub.f32 1.0, %v715
        %v717 = vmul.f32 %v714, %v716
        %v718 = vadd.f32 %v714, %v717
        %vm719 = vweird.f32 %v712
        %vm720 = vweird.f32 %v714
        %vm721 = vmor %vm719, %vm720
        %v722 = vsel %vm721, %v714, %v718
        %v723 = vand.u32 2147483647, %v712
        %vm724 = vcmp.eq.f32.partialorder %v723, 8.507059e+37
        %v725 = vand.u32 %v712, 2147483648
        %v726 = vor.u32 1.1754944e-38, %v725
        %v727 = vsel %vm724, %v726, %v722
        %v728 = vmul.f32 1.0, %v727
        %v729 = vrcp.pop %v713
        %v730 = vmul.f32 %v713, %v729
        %v731 = vsub.f32 1.0, %v730
        %v732 = vmul.f32 %v729, %v731
        %v733 = vadd.f32 %v729, %v732
        %vm734 = vweird.f32 %v713
        %vm735 = vweird.f32 %v729
        %vm736 = vmor %vm734, %vm735
        %v737 = vsel %vm736, %v729, %v733
        %v738 = vand.u32 2147483647, %v713
        %vm739 = vcmp.eq.f32.partialorder %v738, 8.507059e+37
        %v740 = vand.u32 %v713, 2147483648
        %v741 = vor.u32 1.1754944e-38, %v740
        %v742 = vsel %vm739, %v741, %v737
        %v743 = vmul.f32 1.0, %v742
        %v744 = vtanh.pop %v704
        %v745 = vtanh.pop %v705
        %v747 = vrot.slane %v510, 1
        %v748 = vrot.slane %v510, 2
        %749 = vrot.lane.b32.xlu0 %v747, 32
        %v750 = vpop.permute.xlu0 %749
        %751 = vrot.lane.b32.xlu0 %v748, 32
        %v752 = vpop.permute.xlu0 %751
        %v755 = vmul.f32 %v728, %v750
        %v756 = vmul.f32 %v743, %v752
        %759 = vrot.lane.b32.xlu0 %v744, 64
        %v760 = vpop.permute.xlu0 %759
        %761 = vrot.lane.b32.xlu0 %v745, 64
        %v762 = vpop.permute.xlu0 %761
        %v765 = vmul.f32 %v728, %v760
        %v766 = vmul.f32 %v743, %v762
        %769 = vrot.lane.b32.xlu0 %v765, 32
        %v770 = vpop.permute.xlu0 %769
        %771 = vrot.lane.b32.xlu0 %v766, 32
        %v772 = vpop.permute.xlu0 %771
        %v775 = vadd.f32 %v755, %v770
        %v776 = vadd.f32 %v756, %v772
        %v777 = vtanh.pop %v775
        %v778 = vtanh.pop %v776
        %781 = vrot.lane.b32.xlu0 %v777, 64
        %v782 = vpop.permute.xlu0 %781
        %783 = vrot.lane.b32.xlu0 %v778, 64
        %v784 = vpop.permute.xlu0 %783
        %v787 = vmul.f32 %v728, %v782
        %v788 = vmul.f32 %v743, %v784
        %v791 = vrot.slane %v787, 7
        %v792 = vrot.slane %v788, 6
        %vm793 = vcmask 1041409
        %v794 = vsel %vm793, %v792, %v791
        %795 = vrot.lane.b32.xlu0 %v794, 32
        %v796 = vpop.permute.xlu0 %795
        %v797 = vsel %vm282, %v796, 0
        %799 = vmatpush.msra.mxu0 0.0
        %800 = vmatpush.msra.mxu0 0.0
        %801 = vmatpush.msra.mxu0 0.0
        %802 = vmatpush.msra.mxu0 0.0
        %803 = vmatpush.msra.mxu0 0.0
        %804 = vmatpush.msra.mxu0 0.0
        %805 = vmatpush.msra.mxu0 0.0
        %806 = vmatpush.msra.mxu0 0.0
        %807 = vmatpush.msra.mxu0 0.0
        %808 = vmatpush.msra.mxu0 0.0
        %809 = vmatpush.msra.mxu0 0.0
        %810 = vmatpush.msra.mxu0 0.0
        %v811 = vand.u32 %v508, 4294901760
        %812 = vmatpush.msra.mxu0 %v811
        %v813 = vand.u32 %v507, 4294901760
        %814 = vmatpush.msra.mxu0 %v813
        %v815 = vand.u32 %v506, 4294901760
        %816 = vmatpush.msra.mxu0 %v815
        %v817 = vand.u32 %v505, 4294901760
        %818 = vmatpush.msra.mxu0 %v817
        %v819 = vand.u32 %v797, 4294901760
        %v820 = vsub.f32 %v797, %v819
        %v821 = vand.u32 %v820, 4294901760
        %v822 = vsub.f32 %v820, %v821
        %v823 = vand.u32 %v822, 4294901760
        %824 = vmatmul.f32.gmra.mxu0 %v823
        %v825 = vpop.f32.mrf.mxu0
        %v826 = vadd.f32 0.0, %v825
        %827 = vdwg.mxu0
        %828 = vmatpush.msra.mxu0 0.0
        %829 = vmatpush.msra.mxu0 0.0
        %830 = vmatpush.msra.mxu0 0.0
        %831 = vmatpush.msra.mxu0 0.0
        %832 = vmatpush.msra.mxu0 0.0
        %833 = vmatpush.msra.mxu0 0.0
        %834 = vmatpush.msra.mxu0 0.0
        %835 = vmatpush.msra.mxu0 0.0
        %836 = vmatpush.msra.mxu0 0.0
        %837 = vmatpush.msra.mxu0 0.0
        %838 = vmatpush.msra.mxu0 0.0
        %839 = vmatpush.msra.mxu0 0.0
        %v840 = vand.u32 %v508, 4294901760
        %v841 = vsub.f32 %v508, %v840
        %v842 = vand.u32 %v841, 4294901760
        %v843 = vsub.f32 %v841, %v842
        %v844 = vand.u32 %v843, 4294901760
        %845 = vmatpush.msra.mxu0 %v844
        %v846 = vand.u32 %v507, 4294901760
        %v847 = vsub.f32 %v507, %v846
        %v848 = vand.u32 %v847, 4294901760
        %v849 = vsub.f32 %v847, %v848
        %v850 = vand.u32 %v849, 4294901760
        %851 = vmatpush.msra.mxu0 %v850
        %v852 = vand.u32 %v506, 4294901760
        %v853 = vsub.f32 %v506, %v852
        %v854 = vand.u32 %v853, 4294901760
        %v855 = vsub.f32 %v853, %v854
        %v856 = vand.u32 %v855, 4294901760
        %857 = vmatpush.msra.mxu0 %v856
        %v858 = vand.u32 %v505, 4294901760
        %v859 = vsub.f32 %v505, %v858
        %v860 = vand.u32 %v859, 4294901760
        %v861 = vsub.f32 %v859, %v860
        %v862 = vand.u32 %v861, 4294901760
        %863 = vmatpush.msra.mxu0 %v862
        %v864 = vand.u32 %v797, 4294901760
        %865 = vmatmul.f32.gmra.mxu0 %v864
        %v866 = vpop.f32.mrf.mxu0
        %v867 = vadd.f32 %v826, %v866
        %868 = vdwg.mxu0
        %869 = vmatpush.msra.mxu0 0.0
        %870 = vmatpush.msra.mxu0 0.0
        %871 = vmatpush.msra.mxu0 0.0
        %872 = vmatpush.msra.mxu0 0.0
        %873 = vmatpush.msra.mxu0 0.0
        %874 = vmatpush.msra.mxu0 0.0
        %875 = vmatpush.msra.mxu0 0.0
        %876 = vmatpush.msra.mxu0 0.0
        %877 = vmatpush.msra.mxu0 0.0
        %878 = vmatpush.msra.mxu0 0.0
        %879 = vmatpush.msra.mxu0 0.0
        %880 = vmatpush.msra.mxu0 0.0
        %v881 = vand.u32 %v508, 4294901760
        %v882 = vsub.f32 %v508, %v881
        %883 = vmatpush.msra.mxu0 %v882
        %v884 = vand.u32 %v507, 4294901760
        %v885 = vsub.f32 %v507, %v884
        %886 = vmatpush.msra.mxu0 %v885
        %v887 = vand.u32 %v506, 4294901760
        %v888 = vsub.f32 %v506, %v887
        %889 = vmatpush.msra.mxu0 %v888
        %v890 = vand.u32 %v505, 4294901760
        %v891 = vsub.f32 %v505, %v890
        %892 = vmatpush.msra.mxu0 %v891
        %v893 = vand.u32 %v797, 4294901760
        %v894 = vsub.f32 %v797, %v893
        %895 = vmatmul.f32.gmra.mxu0 %v894
        %v896 = vpop.f32.mrf.mxu0
        %v897 = vadd.f32 %v867, %v896
        %898 = vdwg.mxu0
        %899 = vmatpush.msra.mxu0 0.0
        %900 = vmatpush.msra.mxu0 0.0
        %901 = vmatpush.msra.mxu0 0.0
        %902 = vmatpush.msra.mxu0 0.0
        %903 = vmatpush.msra.mxu0 0.0
        %904 = vmatpush.msra.mxu0 0.0
        %905 = vmatpush.msra.mxu0 0.0
        %906 = vmatpush.msra.mxu0 0.0
        %907 = vmatpush.msra.mxu0 0.0
        %908 = vmatpush.msra.mxu0 0.0
        %909 = vmatpush.msra.mxu0 0.0
        %910 = vmatpush.msra.mxu0 0.0
        %v911 = vand.u32 %v508, 4294901760
        %912 = vmatpush.msra.mxu0 %v911
        %v913 = vand.u32 %v507, 4294901760
        %914 = vmatpush.msra.mxu0 %v913
        %v915 = vand.u32 %v506, 4294901760
        %916 = vmatpush.msra.mxu0 %v915
        %v917 = vand.u32 %v505, 4294901760
        %918 = vmatpush.msra.mxu0 %v917
        %v919 = vand.u32 %v797, 4294901760
        %v920 = vsub.f32 %v797, %v919
        %v921 = vand.u32 %v920, 4294901760
        %922 = vmatmul.f32.gmra.mxu0 %v921
        %v923 = vpop.f32.mrf.mxu0
        %v924 = vadd.f32 %v897, %v923
        %925 = vdwg.mxu0
        %926 = vmatpush.msra.mxu0 0.0
        %927 = vmatpush.msra.mxu0 0.0
        %928 = vmatpush.msra.mxu0 0.0
        %929 = vmatpush.msra.mxu0 0.0
        %930 = vmatpush.msra.mxu0 0.0
        %931 = vmatpush.msra.mxu0 0.0
        %932 = vmatpush.msra.mxu0 0.0
        %933 = vmatpush.msra.mxu0 0.0
        %934 = vmatpush.msra.mxu0 0.0
        %935 = vmatpush.msra.mxu0 0.0
        %936 = vmatpush.msra.mxu0 0.0
        %937 = vmatpush.msra.mxu0 0.0
        %v938 = vand.u32 %v508, 4294901760
        %v939 = vsub.f32 %v508, %v938
        %v940 = vand.u32 %v939, 4294901760
        %941 = vmatpush.msra.mxu0 %v940
        %v942 = vand.u32 %v507, 4294901760
        %v943 = vsub.f32 %v507, %v942
        %v944 = vand.u32 %v943, 4294901760
        %945 = vmatpush.msra.mxu0 %v944
        %v946 = vand.u32 %v506, 4294901760
        %v947 = vsub.f32 %v506, %v946
        %v948 = vand.u32 %v947, 4294901760
        %949 = vmatpush.msra.mxu0 %v948
        %v950 = vand.u32 %v505, 4294901760
        %v951 = vsub.f32 %v505, %v950
        %v952 = vand.u32 %v951, 4294901760
        %953 = vmatpush.msra.mxu0 %v952
        %v954 = vand.u32 %v797, 4294901760
        %955 = vmatmul.f32.gmra.mxu0 %v954
        %v956 = vpop.f32.mrf.mxu0
        %v957 = vadd.f32 %v924, %v956
        %958 = vdwg.mxu0
        %959 = vmatpush.msra.mxu0 0.0
        %960 = vmatpush.msra.mxu0 0.0
        %961 = vmatpush.msra.mxu0 0.0
        %962 = vmatpush.msra.mxu0 0.0
        %963 = vmatpush.msra.mxu0 0.0
        %964 = vmatpush.msra.mxu0 0.0
        %965 = vmatpush.msra.mxu0 0.0
        %966 = vmatpush.msra.mxu0 0.0
        %967 = vmatpush.msra.mxu0 0.0
        %968 = vmatpush.msra.mxu0 0.0
        %969 = vmatpush.msra.mxu0 0.0
        %970 = vmatpush.msra.mxu0 0.0
        %v971 = vand.u32 %v508, 4294901760
        %972 = vmatpush.msra.mxu0 %v971
        %v973 = vand.u32 %v507, 4294901760
        %974 = vmatpush.msra.mxu0 %v973
        %v975 = vand.u32 %v506, 4294901760
        %976 = vmatpush.msra.mxu0 %v975
        %v977 = vand.u32 %v505, 4294901760
        %978 = vmatpush.msra.mxu0 %v977
        %v979 = vand.u32 %v797, 4294901760
        %980 = vmatmul.f32.gmra.mxu0 %v979
        %v981 = vpop.f32.mrf.mxu0
        %v982 = vadd.f32 %v957, %v981
        %983 = vdwg.mxu0
        %v985 = vrot.slane %v982, 2
        %v986 = vrot.slane %v982, 3
        %v989 = vadd.f32 %v499, %v985
        %v990 = vadd.f32 %v503, %v986
        %v991 = vxor.u32 %v989, 2147483648
        %v992 = vxor.u32 %v990, 2147483648
        %v993 = vmul.f32 %v991, 1.442695
        %v994 = vpow.pop %v993
        %v995 = vmul.f32 %v992, 1.442695
        %v996 = vpow.pop %v995
        %v997 = vadd.f32 %v994, 1.0
        %v998 = vadd.f32 %v996, 1.0
        %v999 = vrcp.pop %v997
        %v1000 = vmul.f32 %v997, %v999
        %v1001 = vsub.f32 1.0, %v1000
        %v1002 = vmul.f32 %v999, %v1001
        %v1003 = vadd.f32 %v999, %v1002
        %vm1004 = vweird.f32 %v997
        %vm1005 = vweird.f32 %v999
        %vm1006 = vmor %vm1004, %vm1005
        %v1007 = vsel %vm1006, %v999, %v1003
        %v1008 = vand.u32 2147483647, %v997
        %vm1009 = vcmp.eq.f32.partialorder %v1008, 8.507059e+37
        %v1010 = vand.u32 %v997, 2147483648
        %v1011 = vor.u32 1.1754944e-38, %v1010
        %v1012 = vsel %vm1009, %v1011, %v1007
        %v1013 = vmul.f32 1.0, %v1012
        %v1014 = vrcp.pop %v998
        %v1015 = vmul.f32 %v998, %v1014
        %v1016 = vsub.f32 1.0, %v1015
        %v1017 = vmul.f32 %v1014, %v1016
        %v1018 = vadd.f32 %v1014, %v1017
        %vm1019 = vweird.f32 %v998
        %vm1020 = vweird.f32 %v1014
        %vm1021 = vmor %vm1019, %vm1020
        %v1022 = vsel %vm1021, %v1014, %v1018
        %v1023 = vand.u32 2147483647, %v998
        %vm1024 = vcmp.eq.f32.partialorder %v1023, 8.507059e+37
        %v1025 = vand.u32 %v998, 2147483648
        %v1026 = vor.u32 1.1754944e-38, %v1025
        %v1027 = vsel %vm1024, %v1026, %v1022
        %v1028 = vmul.f32 1.0, %v1027
        %v1029 = vtanh.pop %v989
        %v1030 = vtanh.pop %v990
        %v1033 = vrot.slane %v775, 1
        %v1034 = vrot.slane %v776, 1
        %v1037 = vmul.f32 %v1013, %v1033
        %v1038 = vmul.f32 %v1028, %v1034
        %1041 = vrot.lane.b32.xlu0 %v1029, 64
        %v1042 = vpop.permute.xlu0 %1041
        %1043 = vrot.lane.b32.xlu0 %v1030, 64
        %v1044 = vpop.permute.xlu0 %1043
        %v1047 = vmul.f32 %v1013, %v1042
        %v1048 = vmul.f32 %v1028, %v1044
        %1051 = vrot.lane.b32.xlu0 %v1047, 32
        %v1052 = vpop.permute.xlu0 %1051
        %1053 = vrot.lane.b32.xlu0 %v1048, 32
        %v1054 = vpop.permute.xlu0 %1053
        %v1057 = vadd.f32 %v1037, %v1052
        %v1058 = vadd.f32 %v1038, %v1054
        %v1059 = vtanh.pop %v1057
        %v1060 = vtanh.pop %v1058
        %1063 = vrot.lane.b32.xlu0 %v1059, 64
        %v1064 = vpop.permute.xlu0 %1063
        %1065 = vrot.lane.b32.xlu0 %v1060, 64
        %v1066 = vpop.permute.xlu0 %1065
        %v1069 = vmul.f32 %v1013, %v1064
        %v1070 = vmul.f32 %v1028, %v1066
        %v1073 = vrot.slane %v1069, 6
        %v1074 = vrot.slane %v1070, 5
        %v1075 = vsel %vm793, %v1074, %v1073
        %1076 = vrot.lane.b32.xlu0 %v1075, 32
        %v1077 = vpop.permute.xlu0 %1076
        %v1078 = vsel %vm282, %v1077, 0
        %1080 = vmatpush.msra.mxu0 0.0
        %1081 = vmatpush.msra.mxu0 0.0
        %1082 = vmatpush.msra.mxu0 0.0
        %1083 = vmatpush.msra.mxu0 0.0
        %1084 = vmatpush.msra.mxu0 0.0
        %1085 = vmatpush.msra.mxu0 0.0
        %1086 = vmatpush.msra.mxu0 0.0
        %1087 = vmatpush.msra.mxu0 0.0
        %1088 = vmatpush.msra.mxu0 0.0
        %1089 = vmatpush.msra.mxu0 0.0
        %1090 = vmatpush.msra.mxu0 0.0
        %1091 = vmatpush.msra.mxu0 0.0
        %v1092 = vand.u32 %v508, 4294901760
        %1093 = vmatpush.msra.mxu0 %v1092
        %v1094 = vand.u32 %v507, 4294901760
        %1095 = vmatpush.msra.mxu0 %v1094
        %v1096 = vand.u32 %v506, 4294901760
        %1097 = vmatpush.msra.mxu0 %v1096
        %v1098 = vand.u32 %v505, 4294901760
        %1099 = vmatpush.msra.mxu0 %v1098
        %v1100 = vand.u32 %v1078, 4294901760
        %v1101 = vsub.f32 %v1078, %v1100
        %v1102 = vand.u32 %v1101, 4294901760
        %v1103 = vsub.f32 %v1101, %v1102
        %v1104 = vand.u32 %v1103, 4294901760
        %1105 = vmatmul.f32.gmra.mxu0 %v1104
        %v1106 = vpop.f32.mrf.mxu0
        %v1107 = vadd.f32 0.0, %v1106
        %1108 = vdwg.mxu0
        %1109 = vmatpush.msra.mxu0 0.0
        %1110 = vmatpush.msra.mxu0 0.0
        %1111 = vmatpush.msra.mxu0 0.0
        %1112 = vmatpush.msra.mxu0 0.0
        %1113 = vmatpush.msra.mxu0 0.0
        %1114 = vmatpush.msra.mxu0 0.0
        %1115 = vmatpush.msra.mxu0 0.0
        %1116 = vmatpush.msra.mxu0 0.0
        %1117 = vmatpush.msra.mxu0 0.0
        %1118 = vmatpush.msra.mxu0 0.0
        %1119 = vmatpush.msra.mxu0 0.0
        %1120 = vmatpush.msra.mxu0 0.0
        %v1121 = vand.u32 %v508, 4294901760
        %v1122 = vsub.f32 %v508, %v1121
        %v1123 = vand.u32 %v1122, 4294901760
        %v1124 = vsub.f32 %v1122, %v1123
        %v1125 = vand.u32 %v1124, 4294901760
        %1126 = vmatpush.msra.mxu0 %v1125
        %v1127 = vand.u32 %v507, 4294901760
        %v1128 = vsub.f32 %v507, %v1127
        %v1129 = vand.u32 %v1128, 4294901760
        %v1130 = vsub.f32 %v1128, %v1129
        %v1131 = vand.u32 %v1130, 4294901760
        %1132 = vmatpush.msra.mxu0 %v1131
        %v1133 = vand.u32 %v506, 4294901760
        %v1134 = vsub.f32 %v506, %v1133
        %v1135 = vand.u32 %v1134, 4294901760
        %v1136 = vsub.f32 %v1134, %v1135
        %v1137 = vand.u32 %v1136, 4294901760
        %1138 = vmatpush.msra.mxu0 %v1137
        %v1139 = vand.u32 %v505, 4294901760
        %v1140 = vsub.f32 %v505, %v1139
        %v1141 = vand.u32 %v1140, 4294901760
        %v1142 = vsub.f32 %v1140, %v1141
        %v1143 = vand.u32 %v1142, 4294901760
        %1144 = vmatpush.msra.mxu0 %v1143
        %v1145 = vand.u32 %v1078, 4294901760
        %1146 = vmatmul.f32.gmra.mxu0 %v1145
        %v1147 = vpop.f32.mrf.mxu0
        %v1148 = vadd.f32 %v1107, %v1147
        %1149 = vdwg.mxu0
        %1150 = vmatpush.msra.mxu0 0.0
        %1151 = vmatpush.msra.mxu0 0.0
        %1152 = vmatpush.msra.mxu0 0.0
        %1153 = vmatpush.msra.mxu0 0.0
        %1154 = vmatpush.msra.mxu0 0.0
        %1155 = vmatpush.msra.mxu0 0.0
        %1156 = vmatpush.msra.mxu0 0.0
        %1157 = vmatpush.msra.mxu0 0.0
        %1158 = vmatpush.msra.mxu0 0.0
        %1159 = vmatpush.msra.mxu0 0.0
        %1160 = vmatpush.msra.mxu0 0.0
        %1161 = vmatpush.msra.mxu0 0.0
        %v1162 = vand.u32 %v508, 4294901760
        %v1163 = vsub.f32 %v508, %v1162
        %1164 = vmatpush.msra.mxu0 %v1163
        %v1165 = vand.u32 %v507, 4294901760
        %v1166 = vsub.f32 %v507, %v1165
        %1167 = vmatpush.msra.mxu0 %v1166
        %v1168 = vand.u32 %v506, 4294901760
        %v1169 = vsub.f32 %v506, %v1168
        %1170 = vmatpush.msra.mxu0 %v1169
        %v1171 = vand.u32 %v505, 4294901760
        %v1172 = vsub.f32 %v505, %v1171
        %1173 = vmatpush.msra.mxu0 %v1172
        %v1174 = vand.u32 %v1078, 4294901760
        %v1175 = vsub.f32 %v1078, %v1174
        %1176 = vmatmul.f32.gmra.mxu0 %v1175
        %v1177 = vpop.f32.mrf.mxu0
        %v1178 = vadd.f32 %v1148, %v1177
        %1179 = vdwg.mxu0
        %1180 = vmatpush.msra.mxu0 0.0
        %1181 = vmatpush.msra.mxu0 0.0
        %1182 = vmatpush.msra.mxu0 0.0
        %1183 = vmatpush.msra.mxu0 0.0
        %1184 = vmatpush.msra.mxu0 0.0
        %1185 = vmatpush.msra.mxu0 0.0
        %1186 = vmatpush.msra.mxu0 0.0
        %1187 = vmatpush.msra.mxu0 0.0
        %1188 = vmatpush.msra.mxu0 0.0
        %1189 = vmatpush.msra.mxu0 0.0
        %1190 = vmatpush.msra.mxu0 0.0
        %1191 = vmatpush.msra.mxu0 0.0
        %v1192 = vand.u32 %v508, 4294901760
        %1193 = vmatpush.msra.mxu0 %v1192
        %v1194 = vand.u32 %v507, 4294901760
        %1195 = vmatpush.msra.mxu0 %v1194
        %v1196 = vand.u32 %v506, 4294901760
        %1197 = vmatpush.msra.mxu0 %v1196
        %v1198 = vand.u32 %v505, 4294901760
        %1199 = vmatpush.msra.mxu0 %v1198
        %v1200 = vand.u32 %v1078, 4294901760
        %v1201 = vsub.f32 %v1078, %v1200
        %v1202 = vand.u32 %v1201, 4294901760
        %1203 = vmatmul.f32.gmra.mxu0 %v1202
        %v1204 = vpop.f32.mrf.mxu0
        %v1205 = vadd.f32 %v1178, %v1204
        %1206 = vdwg.mxu0
        %1207 = vmatpush.msra.mxu0 0.0
        %1208 = vmatpush.msra.mxu0 0.0
        %1209 = vmatpush.msra.mxu0 0.0
        %1210 = vmatpush.msra.mxu0 0.0
        %1211 = vmatpush.msra.mxu0 0.0
        %1212 = vmatpush.msra.mxu0 0.0
        %1213 = vmatpush.msra.mxu0 0.0
        %1214 = vmatpush.msra.mxu0 0.0
        %1215 = vmatpush.msra.mxu0 0.0
        %1216 = vmatpush.msra.mxu0 0.0
        %1217 = vmatpush.msra.mxu0 0.0
        %1218 = vmatpush.msra.mxu0 0.0
        %v1219 = vand.u32 %v508, 4294901760
        %v1220 = vsub.f32 %v508, %v1219
        %v1221 = vand.u32 %v1220, 4294901760
        %1222 = vmatpush.msra.mxu0 %v1221
        %v1223 = vand.u32 %v507, 4294901760
        %v1224 = vsub.f32 %v507, %v1223
        %v1225 = vand.u32 %v1224, 4294901760
        %1226 = vmatpush.msra.mxu0 %v1225
        %v1227 = vand.u32 %v506, 4294901760
        %v1228 = vsub.f32 %v506, %v1227
        %v1229 = vand.u32 %v1228, 4294901760
        %1230 = vmatpush.msra.mxu0 %v1229
        %v1231 = vand.u32 %v505, 4294901760
        %v1232 = vsub.f32 %v505, %v1231
        %v1233 = vand.u32 %v1232, 4294901760
        %1234 = vmatpush.msra.mxu0 %v1233
        %v1235 = vand.u32 %v1078, 4294901760
        %1236 = vmatmul.f32.gmra.mxu0 %v1235
        %v1237 = vpop.f32.mrf.mxu0
        %v1238 = vadd.f32 %v1205, %v1237
        %1239 = vdwg.mxu0
        %1240 = vmatpush.msra.mxu0 0.0
        %1241 = vmatpush.msra.mxu0 0.0
        %1242 = vmatpush.msra.mxu0 0.0
        %1243 = vmatpush.msra.mxu0 0.0
        %1244 = vmatpush.msra.mxu0 0.0
        %1245 = vmatpush.msra.mxu0 0.0
        %1246 = vmatpush.msra.mxu0 0.0
        %1247 = vmatpush.msra.mxu0 0.0
        %1248 = vmatpush.msra.mxu0 0.0
        %1249 = vmatpush.msra.mxu0 0.0
        %1250 = vmatpush.msra.mxu0 0.0
        %1251 = vmatpush.msra.mxu0 0.0
        %v1252 = vand.u32 %v508, 4294901760
        %1253 = vmatpush.msra.mxu0 %v1252
        %v1254 = vand.u32 %v507, 4294901760
        %1255 = vmatpush.msra.mxu0 %v1254
        %v1256 = vand.u32 %v506, 4294901760
        %1257 = vmatpush.msra.mxu0 %v1256
        %v1258 = vand.u32 %v505, 4294901760
        %1259 = vmatpush.msra.mxu0 %v1258
        %v1260 = vand.u32 %v1078, 4294901760
        %1261 = vmatmul.f32.gmra.mxu0 %v1260
        %v1262 = vpop.f32.mrf.mxu0
        %v1263 = vadd.f32 %v1238, %v1262
        %1264 = vdwg.mxu0
        %v1266 = vrot.slane %v1263, 3
        %v1267 = vrot.slane %v1263, 4
        %v1270 = vadd.f32 %v499, %v1266
        %v1271 = vadd.f32 %v503, %v1267
        %v1272 = vxor.u32 %v1270, 2147483648
        %v1273 = vxor.u32 %v1271, 2147483648
        %v1274 = vmul.f32 %v1272, 1.442695
        %v1275 = vpow.pop %v1274
        %v1276 = vmul.f32 %v1273, 1.442695
        %v1277 = vpow.pop %v1276
        %v1278 = vadd.f32 %v1275, 1.0
        %v1279 = vadd.f32 %v1277, 1.0
        %v1280 = vrcp.pop %v1278
        %v1281 = vmul.f32 %v1278, %v1280
        %v1282 = vsub.f32 1.0, %v1281
        %v1283 = vmul.f32 %v1280, %v1282
        %v1284 = vadd.f32 %v1280, %v1283
        %vm1285 = vweird.f32 %v1278
        %vm1286 = vweird.f32 %v1280
        %vm1287 = vmor %vm1285, %vm1286
        %v1288 = vsel %vm1287, %v1280, %v1284
        %v1289 = vand.u32 2147483647, %v1278
        %vm1290 = vcmp.eq.f32.partialorder %v1289, 8.507059e+37
        %v1291 = vand.u32 %v1278, 2147483648
        %v1292 = vor.u32 1.1754944e-38, %v1291
        %v1293 = vsel %vm1290, %v1292, %v1288
        %v1294 = vmul.f32 1.0, %v1293
        %v1295 = vrcp.pop %v1279
        %v1296 = vmul.f32 %v1279, %v1295
        %v1297 = vsub.f32 1.0, %v1296
        %v1298 = vmul.f32 %v1295, %v1297
        %v1299 = vadd.f32 %v1295, %v1298
        %vm1300 = vweird.f32 %v1279
        %vm1301 = vweird.f32 %v1295
        %vm1302 = vmor %vm1300, %vm1301
        %v1303 = vsel %vm1302, %v1295, %v1299
        %v1304 = vand.u32 2147483647, %v1279
        %vm1305 = vcmp.eq.f32.partialorder %v1304, 8.507059e+37
        %v1306 = vand.u32 %v1279, 2147483648
        %v1307 = vor.u32 1.1754944e-38, %v1306
        %v1308 = vsel %vm1305, %v1307, %v1303
        %v1309 = vmul.f32 1.0, %v1308
        %v1310 = vtanh.pop %v1270
        %v1311 = vtanh.pop %v1271
        %v1314 = vrot.slane %v1057, 1
        %v1315 = vrot.slane %v1058, 1
        %v1318 = vmul.f32 %v1294, %v1314
        %v1319 = vmul.f32 %v1309, %v1315
        %1322 = vrot.lane.b32.xlu0 %v1310, 64
        %v1323 = vpop.permute.xlu0 %1322
        %1324 = vrot.lane.b32.xlu0 %v1311, 64
        %v1325 = vpop.permute.xlu0 %1324
        %v1328 = vmul.f32 %v1294, %v1323
        %v1329 = vmul.f32 %v1309, %v1325
        %1332 = vrot.lane.b32.xlu0 %v1328, 32
        %v1333 = vpop.permute.xlu0 %1332
        %1334 = vrot.lane.b32.xlu0 %v1329, 32
        %v1335 = vpop.permute.xlu0 %1334
        %v1338 = vadd.f32 %v1318, %v1333
        %v1339 = vadd.f32 %v1319, %v1335
        %v1340 = vtanh.pop %v1338
        %v1341 = vtanh.pop %v1339
        %1344 = vrot.lane.b32.xlu0 %v1340, 64
        %v1345 = vpop.permute.xlu0 %1344
        %1346 = vrot.lane.b32.xlu0 %v1341, 64
        %v1347 = vpop.permute.xlu0 %1346
        %v1350 = vmul.f32 %v1294, %v1345
        %v1351 = vmul.f32 %v1309, %v1347
        %v1354 = vrot.slane %v1350, 5
        %v1355 = vrot.slane %v1351, 4
        %v1356 = vsel %vm793, %v1355, %v1354
        %1357 = vrot.lane.b32.xlu0 %v1356, 32
        %v1358 = vpop.permute.xlu0 %1357
        %v1359 = vsel %vm282, %v1358, 0
        %1361 = vmatpush.msra.mxu0 0.0
        %1362 = vmatpush.msra.mxu0 0.0
        %1363 = vmatpush.msra.mxu0 0.0
        %1364 = vmatpush.msra.mxu0 0.0
        %1365 = vmatpush.msra.mxu0 0.0
        %1366 = vmatpush.msra.mxu0 0.0
        %1367 = vmatpush.msra.mxu0 0.0
        %1368 = vmatpush.msra.mxu0 0.0
        %1369 = vmatpush.msra.mxu0 0.0
        %1370 = vmatpush.msra.mxu0 0.0
        %1371 = vmatpush.msra.mxu0 0.0
        %1372 = vmatpush.msra.mxu0 0.0
        %v1373 = vand.u32 %v508, 4294901760
        %1374 = vmatpush.msra.mxu0 %v1373
        %v1375 = vand.u32 %v507, 4294901760
        %1376 = vmatpush.msra.mxu0 %v1375
        %v1377 = vand.u32 %v506, 4294901760
        %1378 = vmatpush.msra.mxu0 %v1377
        %v1379 = vand.u32 %v505, 4294901760
        %1380 = vmatpush.msra.mxu0 %v1379
        %v1381 = vand.u32 %v1359, 4294901760
        %v1382 = vsub.f32 %v1359, %v1381
        %v1383 = vand.u32 %v1382, 4294901760
        %v1384 = vsub.f32 %v1382, %v1383
        %v1385 = vand.u32 %v1384, 4294901760
        %1386 = vmatmul.f32.gmra.mxu0 %v1385
        %v1387 = vpop.f32.mrf.mxu0
        %v1388 = vadd.f32 0.0, %v1387
        %1389 = vdwg.mxu0
        %1390 = vmatpush.msra.mxu0 0.0
        %1391 = vmatpush.msra.mxu0 0.0
        %1392 = vmatpush.msra.mxu0 0.0
        %1393 = vmatpush.msra.mxu0 0.0
        %1394 = vmatpush.msra.mxu0 0.0
        %1395 = vmatpush.msra.mxu0 0.0
        %1396 = vmatpush.msra.mxu0 0.0
        %1397 = vmatpush.msra.mxu0 0.0
        %1398 = vmatpush.msra.mxu0 0.0
        %1399 = vmatpush.msra.mxu0 0.0
        %1400 = vmatpush.msra.mxu0 0.0
        %1401 = vmatpush.msra.mxu0 0.0
        %v1402 = vand.u32 %v508, 4294901760
        %v1403 = vsub.f32 %v508, %v1402
        %v1404 = vand.u32 %v1403, 4294901760
        %v1405 = vsub.f32 %v1403, %v1404
        %v1406 = vand.u32 %v1405, 4294901760
        %1407 = vmatpush.msra.mxu0 %v1406
        %v1408 = vand.u32 %v507, 4294901760
        %v1409 = vsub.f32 %v507, %v1408
        %v1410 = vand.u32 %v1409, 4294901760
        %v1411 = vsub.f32 %v1409, %v1410
        %v1412 = vand.u32 %v1411, 4294901760
        %1413 = vmatpush.msra.mxu0 %v1412
        %v1414 = vand.u32 %v506, 4294901760
        %v1415 = vsub.f32 %v506, %v1414
        %v1416 = vand.u32 %v1415, 4294901760
        %v1417 = vsub.f32 %v1415, %v1416
        %v1418 = vand.u32 %v1417, 4294901760
        %1419 = vmatpush.msra.mxu0 %v1418
        %v1420 = vand.u32 %v505, 4294901760
        %v1421 = vsub.f32 %v505, %v1420
        %v1422 = vand.u32 %v1421, 4294901760
        %v1423 = vsub.f32 %v1421, %v1422
        %v1424 = vand.u32 %v1423, 4294901760
        %1425 = vmatpush.msra.mxu0 %v1424
        %v1426 = vand.u32 %v1359, 4294901760
        %1427 = vmatmul.f32.gmra.mxu0 %v1426
        %v1428 = vpop.f32.mrf.mxu0
        %v1429 = vadd.f32 %v1388, %v1428
        %1430 = vdwg.mxu0
        %1431 = vmatpush.msra.mxu0 0.0
        %1432 = vmatpush.msra.mxu0 0.0
        %1433 = vmatpush.msra.mxu0 0.0
        %1434 = vmatpush.msra.mxu0 0.0
        %1435 = vmatpush.msra.mxu0 0.0
        %1436 = vmatpush.msra.mxu0 0.0
        %1437 = vmatpush.msra.mxu0 0.0
        %1438 = vmatpush.msra.mxu0 0.0
        %1439 = vmatpush.msra.mxu0 0.0
        %1440 = vmatpush.msra.mxu0 0.0
        %1441 = vmatpush.msra.mxu0 0.0
        %1442 = vmatpush.msra.mxu0 0.0
        %v1443 = vand.u32 %v508, 4294901760
        %v1444 = vsub.f32 %v508, %v1443
        %1445 = vmatpush.msra.mxu0 %v1444
        %v1446 = vand.u32 %v507, 4294901760
        %v1447 = vsub.f32 %v507, %v1446
        %1448 = vmatpush.msra.mxu0 %v1447
        %v1449 = vand.u32 %v506, 4294901760
        %v1450 = vsub.f32 %v506, %v1449
        %1451 = vmatpush.msra.mxu0 %v1450
        %v1452 = vand.u32 %v505, 4294901760
        %v1453 = vsub.f32 %v505, %v1452
        %1454 = vmatpush.msra.mxu0 %v1453
        %v1455 = vand.u32 %v1359, 4294901760
        %v1456 = vsub.f32 %v1359, %v1455
        %1457 = vmatmul.f32.gmra.mxu0 %v1456
        %v1458 = vpop.f32.mrf.mxu0
        %v1459 = vadd.f32 %v1429, %v1458
        %1460 = vdwg.mxu0
        %1461 = vmatpush.msra.mxu0 0.0
        %1462 = vmatpush.msra.mxu0 0.0
        %1463 = vmatpush.msra.mxu0 0.0
        %1464 = vmatpush.msra.mxu0 0.0
        %1465 = vmatpush.msra.mxu0 0.0
        %1466 = vmatpush.msra.mxu0 0.0
        %1467 = vmatpush.msra.mxu0 0.0
        %1468 = vmatpush.msra.mxu0 0.0
        %1469 = vmatpush.msra.mxu0 0.0
        %1470 = vmatpush.msra.mxu0 0.0
        %1471 = vmatpush.msra.mxu0 0.0
        %1472 = vmatpush.msra.mxu0 0.0
        %v1473 = vand.u32 %v508, 4294901760
        %1474 = vmatpush.msra.mxu0 %v1473
        %v1475 = vand.u32 %v507, 4294901760
        %1476 = vmatpush.msra.mxu0 %v1475
        %v1477 = vand.u32 %v506, 4294901760
        %1478 = vmatpush.msra.mxu0 %v1477
        %v1479 = vand.u32 %v505, 4294901760
        %1480 = vmatpush.msra.mxu0 %v1479
        %v1481 = vand.u32 %v1359, 4294901760
        %v1482 = vsub.f32 %v1359, %v1481
        %v1483 = vand.u32 %v1482, 4294901760
        %1484 = vmatmul.f32.gmra.mxu0 %v1483
        %v1485 = vpop.f32.mrf.mxu0
        %v1486 = vadd.f32 %v1459, %v1485
        %1487 = vdwg.mxu0
        %1488 = vmatpush.msra.mxu0 0.0
        %1489 = vmatpush.msra.mxu0 0.0
        %1490 = vmatpush.msra.mxu0 0.0
        %1491 = vmatpush.msra.mxu0 0.0
        %1492 = vmatpush.msra.mxu0 0.0
        %1493 = vmatpush.msra.mxu0 0.0
        %1494 = vmatpush.msra.mxu0 0.0
        %1495 = vmatpush.msra.mxu0 0.0
        %1496 = vmatpush.msra.mxu0 0.0
        %1497 = vmatpush.msra.mxu0 0.0
        %1498 = vmatpush.msra.mxu0 0.0
        %1499 = vmatpush.msra.mxu0 0.0
        %v1500 = vand.u32 %v508, 4294901760
        %v1501 = vsub.f32 %v508, %v1500
        %v1502 = vand.u32 %v1501, 4294901760
        %1503 = vmatpush.msra.mxu0 %v1502
        %v1504 = vand.u32 %v507, 4294901760
        %v1505 = vsub.f32 %v507, %v1504
        %v1506 = vand.u32 %v1505, 4294901760
        %1507 = vmatpush.msra.mxu0 %v1506
        %v1508 = vand.u32 %v506, 4294901760
        %v1509 = vsub.f32 %v506, %v1508
        %v1510 = vand.u32 %v1509, 4294901760
        %1511 = vmatpush.msra.mxu0 %v1510
        %v1512 = vand.u32 %v505, 4294901760
        %v1513 = vsub.f32 %v505, %v1512
        %v1514 = vand.u32 %v1513, 4294901760
        %1515 = vmatpush.msra.mxu0 %v1514
        %v1516 = vand.u32 %v1359, 4294901760
        %1517 = vmatmul.f32.gmra.mxu0 %v1516
        %v1518 = vpop.f32.mrf.mxu0
        %v1519 = vadd.f32 %v1486, %v1518
        %1520 = vdwg.mxu0
        %1521 = vmatpush.msra.mxu0 0.0
        %1522 = vmatpush.msra.mxu0 0.0
        %1523 = vmatpush.msra.mxu0 0.0
        %1524 = vmatpush.msra.mxu0 0.0
        %1525 = vmatpush.msra.mxu0 0.0
        %1526 = vmatpush.msra.mxu0 0.0
        %1527 = vmatpush.msra.mxu0 0.0
        %1528 = vmatpush.msra.mxu0 0.0
        %1529 = vmatpush.msra.mxu0 0.0
        %1530 = vmatpush.msra.mxu0 0.0
        %1531 = vmatpush.msra.mxu0 0.0
        %1532 = vmatpush.msra.mxu0 0.0
        %v1533 = vand.u32 %v508, 4294901760
        %1534 = vmatpush.msra.mxu0 %v1533
        %v1535 = vand.u32 %v507, 4294901760
        %1536 = vmatpush.msra.mxu0 %v1535
        %v1537 = vand.u32 %v506, 4294901760
        %1538 = vmatpush.msra.mxu0 %v1537
        %v1539 = vand.u32 %v505, 4294901760
        %1540 = vmatpush.msra.mxu0 %v1539
        %v1541 = vand.u32 %v1359, 4294901760
        %1542 = vmatmul.f32.gmra.mxu0 %v1541
        %v1543 = vpop.f32.mrf.mxu0
        %v1544 = vadd.f32 %v1519, %v1543
        %1545 = vdwg.mxu0
        %v1547 = vrot.slane %v1544, 4
        %v1548 = vrot.slane %v1544, 5
        %v1551 = vadd.f32 %v499, %v1547
        %v1552 = vadd.f32 %v503, %v1548
        %v1553 = vxor.u32 %v1551, 2147483648
        %v1554 = vxor.u32 %v1552, 2147483648
        %v1555 = vmul.f32 %v1553, 1.442695
        %v1556 = vpow.pop %v1555
        %v1557 = vmul.f32 %v1554, 1.442695
        %v1558 = vpow.pop %v1557
        %v1559 = vadd.f32 %v1556, 1.0
        %v1560 = vadd.f32 %v1558, 1.0
        %v1561 = vrcp.pop %v1559
        %v1562 = vmul.f32 %v1559, %v1561
        %v1563 = vsub.f32 1.0, %v1562
        %v1564 = vmul.f32 %v1561, %v1563
        %v1565 = vadd.f32 %v1561, %v1564
        %vm1566 = vweird.f32 %v1559
        %vm1567 = vweird.f32 %v1561
        %vm1568 = vmor %vm1566, %vm1567
        %v1569 = vsel %vm1568, %v1561, %v1565
        %v1570 = vand.u32 2147483647, %v1559
        %vm1571 = vcmp.eq.f32.partialorder %v1570, 8.507059e+37
        %v1572 = vand.u32 %v1559, 2147483648
        %v1573 = vor.u32 1.1754944e-38, %v1572
        %v1574 = vsel %vm1571, %v1573, %v1569
        %v1575 = vmul.f32 1.0, %v1574
        %v1576 = vrcp.pop %v1560
        %v1577 = vmul.f32 %v1560, %v1576
        %v1578 = vsub.f32 1.0, %v1577
        %v1579 = vmul.f32 %v1576, %v1578
        %v1580 = vadd.f32 %v1576, %v1579
        %vm1581 = vweird.f32 %v1560
        %vm1582 = vweird.f32 %v1576
        %vm1583 = vmor %vm1581, %vm1582
        %v1584 = vsel %vm1583, %v1576, %v1580
        %v1585 = vand.u32 2147483647, %v1560
        %vm1586 = vcmp.eq.f32.partialorder %v1585, 8.507059e+37
        %v1587 = vand.u32 %v1560, 2147483648
        %v1588 = vor.u32 1.1754944e-38, %v1587
        %v1589 = vsel %vm1586, %v1588, %v1584
        %v1590 = vmul.f32 1.0, %v1589
        %v1591 = vtanh.pop %v1551
        %v1592 = vtanh.pop %v1552
        %v1595 = vrot.slane %v1338, 1
        %v1596 = vrot.slane %v1339, 1
        %v1599 = vmul.f32 %v1575, %v1595
        %v1600 = vmul.f32 %v1590, %v1596
        %1603 = vrot.lane.b32.xlu0 %v1591, 64
        %v1604 = vpop.permute.xlu0 %1603
        %1605 = vrot.lane.b32.xlu0 %v1592, 64
        %v1606 = vpop.permute.xlu0 %1605
        %v1609 = vmul.f32 %v1575, %v1604
        %v1610 = vmul.f32 %v1590, %v1606
        %1613 = vrot.lane.b32.xlu0 %v1609, 32
        %v1614 = vpop.permute.xlu0 %1613
        %1615 = vrot.lane.b32.xlu0 %v1610, 32
        %v1616 = vpop.permute.xlu0 %1615
        %v1619 = vadd.f32 %v1599, %v1614
        %v1620 = vadd.f32 %v1600, %v1616
        %v1621 = vtanh.pop %v1619
        %v1622 = vtanh.pop %v1620
        %1625 = vrot.lane.b32.xlu0 %v1621, 64
        %v1626 = vpop.permute.xlu0 %1625
        %1627 = vrot.lane.b32.xlu0 %v1622, 64
        %v1628 = vpop.permute.xlu0 %1627
        %v1631 = vmul.f32 %v1575, %v1626
        %v1632 = vmul.f32 %v1590, %v1628
        %v1635 = vrot.slane %v1631, 4
        %v1636 = vrot.slane %v1632, 3
        %v1637 = vsel %vm793, %v1636, %v1635
        %1638 = vrot.lane.b32.xlu0 %v1637, 32
        %v1639 = vpop.permute.xlu0 %1638
        %v1640 = vsel %vm282, %v1639, 0
        %1642 = vmatpush.msra.mxu0 0.0
        %1643 = vmatpush.msra.mxu0 0.0
        %1644 = vmatpush.msra.mxu0 0.0
        %1645 = vmatpush.msra.mxu0 0.0
        %1646 = vmatpush.msra.mxu0 0.0
        %1647 = vmatpush.msra.mxu0 0.0
        %1648 = vmatpush.msra.mxu0 0.0
        %1649 = vmatpush.msra.mxu0 0.0
        %1650 = vmatpush.msra.mxu0 0.0
        %1651 = vmatpush.msra.mxu0 0.0
        %1652 = vmatpush.msra.mxu0 0.0
        %1653 = vmatpush.msra.mxu0 0.0
        %v1654 = vand.u32 %v508, 4294901760
        %1655 = vmatpush.msra.mxu0 %v1654
        %v1656 = vand.u32 %v507, 4294901760
        %1657 = vmatpush.msra.mxu0 %v1656
        %v1658 = vand.u32 %v506, 4294901760
        %1659 = vmatpush.msra.mxu0 %v1658
        %v1660 = vand.u32 %v505, 4294901760
        %1661 = vmatpush.msra.mxu0 %v1660
        %v1662 = vand.u32 %v1640, 4294901760
        %v1663 = vsub.f32 %v1640, %v1662
        %v1664 = vand.u32 %v1663, 4294901760
        %v1665 = vsub.f32 %v1663, %v1664
        %v1666 = vand.u32 %v1665, 4294901760
        %1667 = vmatmul.f32.gmra.mxu0 %v1666
        %v1668 = vpop.f32.mrf.mxu0
        %v1669 = vadd.f32 0.0, %v1668
        %1670 = vdwg.mxu0
        %1671 = vmatpush.msra.mxu0 0.0
        %1672 = vmatpush.msra.mxu0 0.0
        %1673 = vmatpush.msra.mxu0 0.0
        %1674 = vmatpush.msra.mxu0 0.0
        %1675 = vmatpush.msra.mxu0 0.0
        %1676 = vmatpush.msra.mxu0 0.0
        %1677 = vmatpush.msra.mxu0 0.0
        %1678 = vmatpush.msra.mxu0 0.0
        %1679 = vmatpush.msra.mxu0 0.0
        %1680 = vmatpush.msra.mxu0 0.0
        %1681 = vmatpush.msra.mxu0 0.0
        %1682 = vmatpush.msra.mxu0 0.0
        %v1683 = vand.u32 %v508, 4294901760
        %v1684 = vsub.f32 %v508, %v1683
        %v1685 = vand.u32 %v1684, 4294901760
        %v1686 = vsub.f32 %v1684, %v1685
        %v1687 = vand.u32 %v1686, 4294901760
        %1688 = vmatpush.msra.mxu0 %v1687
        %v1689 = vand.u32 %v507, 4294901760
        %v1690 = vsub.f32 %v507, %v1689
        %v1691 = vand.u32 %v1690, 4294901760
        %v1692 = vsub.f32 %v1690, %v1691
        %v1693 = vand.u32 %v1692, 4294901760
        %1694 = vmatpush.msra.mxu0 %v1693
        %v1695 = vand.u32 %v506, 4294901760
        %v1696 = vsub.f32 %v506, %v1695
        %v1697 = vand.u32 %v1696, 4294901760
        %v1698 = vsub.f32 %v1696, %v1697
        %v1699 = vand.u32 %v1698, 4294901760
        %1700 = vmatpush.msra.mxu0 %v1699
        %v1701 = vand.u32 %v505, 4294901760
        %v1702 = vsub.f32 %v505, %v1701
        %v1703 = vand.u32 %v1702, 4294901760
        %v1704 = vsub.f32 %v1702, %v1703
        %v1705 = vand.u32 %v1704, 4294901760
        %1706 = vmatpush.msra.mxu0 %v1705
        %v1707 = vand.u32 %v1640, 4294901760
        %1708 = vmatmul.f32.gmra.mxu0 %v1707
        %v1709 = vpop.f32.mrf.mxu0
        %v1710 = vadd.f32 %v1669, %v1709
        %1711 = vdwg.mxu0
        %1712 = vmatpush.msra.mxu0 0.0
        %1713 = vmatpush.msra.mxu0 0.0
        %1714 = vmatpush.msra.mxu0 0.0
        %1715 = vmatpush.msra.mxu0 0.0
        %1716 = vmatpush.msra.mxu0 0.0
        %1717 = vmatpush.msra.mxu0 0.0
        %1718 = vmatpush.msra.mxu0 0.0
        %1719 = vmatpush.msra.mxu0 0.0
        %1720 = vmatpush.msra.mxu0 0.0
        %1721 = vmatpush.msra.mxu0 0.0
        %1722 = vmatpush.msra.mxu0 0.0
        %1723 = vmatpush.msra.mxu0 0.0
        %v1724 = vand.u32 %v508, 4294901760
        %v1725 = vsub.f32 %v508, %v1724
        %1726 = vmatpush.msra.mxu0 %v1725
        %v1727 = vand.u32 %v507, 4294901760
        %v1728 = vsub.f32 %v507, %v1727
        %1729 = vmatpush.msra.mxu0 %v1728
        %v1730 = vand.u32 %v506, 4294901760
        %v1731 = vsub.f32 %v506, %v1730
        %1732 = vmatpush.msra.mxu0 %v1731
        %v1733 = vand.u32 %v505, 4294901760
        %v1734 = vsub.f32 %v505, %v1733
        %1735 = vmatpush.msra.mxu0 %v1734
        %v1736 = vand.u32 %v1640, 4294901760
        %v1737 = vsub.f32 %v1640, %v1736
        %1738 = vmatmul.f32.gmra.mxu0 %v1737
        %v1739 = vpop.f32.mrf.mxu0
        %v1740 = vadd.f32 %v1710, %v1739
        %1741 = vdwg.mxu0
        %1742 = vmatpush.msra.mxu0 0.0
        %1743 = vmatpush.msra.mxu0 0.0
        %1744 = vmatpush.msra.mxu0 0.0
        %1745 = vmatpush.msra.mxu0 0.0
        %1746 = vmatpush.msra.mxu0 0.0
        %1747 = vmatpush.msra.mxu0 0.0
        %1748 = vmatpush.msra.mxu0 0.0
        %1749 = vmatpush.msra.mxu0 0.0
        %1750 = vmatpush.msra.mxu0 0.0
        %1751 = vmatpush.msra.mxu0 0.0
        %1752 = vmatpush.msra.mxu0 0.0
        %1753 = vmatpush.msra.mxu0 0.0
        %v1754 = vand.u32 %v508, 4294901760
        %1755 = vmatpush.msra.mxu0 %v1754
        %v1756 = vand.u32 %v507, 4294901760
        %1757 = vmatpush.msra.mxu0 %v1756
        %v1758 = vand.u32 %v506, 4294901760
        %1759 = vmatpush.msra.mxu0 %v1758
        %v1760 = vand.u32 %v505, 4294901760
        %1761 = vmatpush.msra.mxu0 %v1760
        %v1762 = vand.u32 %v1640, 4294901760
        %v1763 = vsub.f32 %v1640, %v1762
        %v1764 = vand.u32 %v1763, 4294901760
        %1765 = vmatmul.f32.gmra.mxu0 %v1764
        %v1766 = vpop.f32.mrf.mxu0
        %v1767 = vadd.f32 %v1740, %v1766
        %1768 = vdwg.mxu0
        %1769 = vmatpush.msra.mxu0 0.0
        %1770 = vmatpush.msra.mxu0 0.0
        %1771 = vmatpush.msra.mxu0 0.0
        %1772 = vmatpush.msra.mxu0 0.0
        %1773 = vmatpush.msra.mxu0 0.0
        %1774 = vmatpush.msra.mxu0 0.0
        %1775 = vmatpush.msra.mxu0 0.0
        %1776 = vmatpush.msra.mxu0 0.0
        %1777 = vmatpush.msra.mxu0 0.0
        %1778 = vmatpush.msra.mxu0 0.0
        %1779 = vmatpush.msra.mxu0 0.0
        %1780 = vmatpush.msra.mxu0 0.0
        %v1781 = vand.u32 %v508, 4294901760
        %v1782 = vsub.f32 %v508, %v1781
        %v1783 = vand.u32 %v1782, 4294901760
        %1784 = vmatpush.msra.mxu0 %v1783
        %v1785 = vand.u32 %v507, 4294901760
        %v1786 = vsub.f32 %v507, %v1785
        %v1787 = vand.u32 %v1786, 4294901760
        %1788 = vmatpush.msra.mxu0 %v1787
        %v1789 = vand.u32 %v506, 4294901760
        %v1790 = vsub.f32 %v506, %v1789
        %v1791 = vand.u32 %v1790, 4294901760
        %1792 = vmatpush.msra.mxu0 %v1791
        %v1793 = vand.u32 %v505, 4294901760
        %v1794 = vsub.f32 %v505, %v1793
        %v1795 = vand.u32 %v1794, 4294901760
        %1796 = vmatpush.msra.mxu0 %v1795
        %v1797 = vand.u32 %v1640, 4294901760
        %1798 = vmatmul.f32.gmra.mxu0 %v1797
        %v1799 = vpop.f32.mrf.mxu0
        %v1800 = vadd.f32 %v1767, %v1799
        %1801 = vdwg.mxu0
        %1802 = vmatpush.msra.mxu0 0.0
        %1803 = vmatpush.msra.mxu0 0.0
        %1804 = vmatpush.msra.mxu0 0.0
        %1805 = vmatpush.msra.mxu0 0.0
        %1806 = vmatpush.msra.mxu0 0.0
        %1807 = vmatpush.msra.mxu0 0.0
        %1808 = vmatpush.msra.mxu0 0.0
        %1809 = vmatpush.msra.mxu0 0.0
        %1810 = vmatpush.msra.mxu0 0.0
        %1811 = vmatpush.msra.mxu0 0.0
        %1812 = vmatpush.msra.mxu0 0.0
        %1813 = vmatpush.msra.mxu0 0.0
        %v1814 = vand.u32 %v508, 4294901760
        %1815 = vmatpush.msra.mxu0 %v1814
        %v1816 = vand.u32 %v507, 4294901760
        %1817 = vmatpush.msra.mxu0 %v1816
        %v1818 = vand.u32 %v506, 4294901760
        %1819 = vmatpush.msra.mxu0 %v1818
        %v1820 = vand.u32 %v505, 4294901760
        %1821 = vmatpush.msra.mxu0 %v1820
        %v1822 = vand.u32 %v1640, 4294901760
        %1823 = vmatmul.f32.gmra.mxu0 %v1822
        %v1824 = vpop.f32.mrf.mxu0
        %v1825 = vadd.f32 %v1800, %v1824
        %1826 = vdwg.mxu0
        %v1828 = vrot.slane %v1825, 5
        %v1829 = vrot.slane %v1825, 6
        %v1832 = vadd.f32 %v499, %v1828
        %v1833 = vadd.f32 %v503, %v1829
        %v1834 = vxor.u32 %v1832, 2147483648
        %v1835 = vxor.u32 %v1833, 2147483648
        %v1836 = vmul.f32 %v1834, 1.442695
        %v1837 = vpow.pop %v1836
        %v1838 = vmul.f32 %v1835, 1.442695
        %v1839 = vpow.pop %v1838
        %v1840 = vadd.f32 %v1837, 1.0
        %v1841 = vadd.f32 %v1839, 1.0
        %v1842 = vrcp.pop %v1840
        %v1843 = vmul.f32 %v1840, %v1842
        %v1844 = vsub.f32 1.0, %v1843
        %v1845 = vmul.f32 %v1842, %v1844
        %v1846 = vadd.f32 %v1842, %v1845
        %vm1847 = vweird.f32 %v1840
        %vm1848 = vweird.f32 %v1842
        %vm1849 = vmor %vm1847, %vm1848
        %v1850 = vsel %vm1849, %v1842, %v1846
        %v1851 = vand.u32 2147483647, %v1840
        %vm1852 = vcmp.eq.f32.partialorder %v1851, 8.507059e+37
        %v1853 = vand.u32 %v1840, 2147483648
        %v1854 = vor.u32 1.1754944e-38, %v1853
        %v1855 = vsel %vm1852, %v1854, %v1850
        %v1856 = vmul.f32 1.0, %v1855
        %v1857 = vrcp.pop %v1841
        %v1858 = vmul.f32 %v1841, %v1857
        %v1859 = vsub.f32 1.0, %v1858
        %v1860 = vmul.f32 %v1857, %v1859
        %v1861 = vadd.f32 %v1857, %v1860
        %vm1862 = vweird.f32 %v1841
        %vm1863 = vweird.f32 %v1857
        %vm1864 = vmor %vm1862, %vm1863
        %v1865 = vsel %vm1864, %v1857, %v1861
        %v1866 = vand.u32 2147483647, %v1841
        %vm1867 = vcmp.eq.f32.partialorder %v1866, 8.507059e+37
        %v1868 = vand.u32 %v1841, 2147483648
        %v1869 = vor.u32 1.1754944e-38, %v1868
        %v1870 = vsel %vm1867, %v1869, %v1865
        %v1871 = vmul.f32 1.0, %v1870
        %v1872 = vtanh.pop %v1832
        %v1873 = vtanh.pop %v1833
        %v1876 = vrot.slane %v1619, 1
        %v1877 = vrot.slane %v1620, 1
        %v1880 = vmul.f32 %v1856, %v1876
        %v1881 = vmul.f32 %v1871, %v1877
        %1884 = vrot.lane.b32.xlu0 %v1872, 64
        %v1885 = vpop.permute.xlu0 %1884
        %1886 = vrot.lane.b32.xlu0 %v1873, 64
        %v1887 = vpop.permute.xlu0 %1886
        %v1890 = vmul.f32 %v1856, %v1885
        %v1891 = vmul.f32 %v1871, %v1887
        %1894 = vrot.lane.b32.xlu0 %v1890, 32
        %v1895 = vpop.permute.xlu0 %1894
        %1896 = vrot.lane.b32.xlu0 %v1891, 32
        %v1897 = vpop.permute.xlu0 %1896
        %v1900 = vadd.f32 %v1880, %v1895
        %v1901 = vadd.f32 %v1881, %v1897
        %v1902 = vtanh.pop %v1900
        %v1903 = vtanh.pop %v1901
        %1906 = vrot.lane.b32.xlu0 %v1902, 64
        %v1907 = vpop.permute.xlu0 %1906
        %1908 = vrot.lane.b32.xlu0 %v1903, 64
        %v1909 = vpop.permute.xlu0 %1908
        %v1912 = vmul.f32 %v1856, %v1907
        %v1913 = vmul.f32 %v1871, %v1909
        %v1916 = vrot.slane %v1912, 3
        %v1917 = vrot.slane %v1913, 2
        %v1918 = vsel %vm793, %v1917, %v1916
        %1919 = vrot.lane.b32.xlu0 %v1918, 32
        %v1920 = vpop.permute.xlu0 %1919
        %v1921 = vsel %vm282, %v1920, 0
        %1923 = vmatpush.msra.mxu0 0.0
        %1924 = vmatpush.msra.mxu0 0.0
        %1925 = vmatpush.msra.mxu0 0.0
        %1926 = vmatpush.msra.mxu0 0.0
        %1927 = vmatpush.msra.mxu0 0.0
        %1928 = vmatpush.msra.mxu0 0.0
        %1929 = vmatpush.msra.mxu0 0.0
        %1930 = vmatpush.msra.mxu0 0.0
        %1931 = vmatpush.msra.mxu0 0.0
        %1932 = vmatpush.msra.mxu0 0.0
        %1933 = vmatpush.msra.mxu0 0.0
        %1934 = vmatpush.msra.mxu0 0.0
        %v1935 = vand.u32 %v508, 4294901760
        %1936 = vmatpush.msra.mxu0 %v1935
        %v1937 = vand.u32 %v507, 4294901760
        %1938 = vmatpush.msra.mxu0 %v1937
        %v1939 = vand.u32 %v506, 4294901760
        %1940 = vmatpush.msra.mxu0 %v1939
        %v1941 = vand.u32 %v505, 4294901760
        %1942 = vmatpush.msra.mxu0 %v1941
        %v1943 = vand.u32 %v1921, 4294901760
        %v1944 = vsub.f32 %v1921, %v1943
        %v1945 = vand.u32 %v1944, 4294901760
        %v1946 = vsub.f32 %v1944, %v1945
        %v1947 = vand.u32 %v1946, 4294901760
        %1948 = vmatmul.f32.gmra.mxu0 %v1947
        %v1949 = vpop.f32.mrf.mxu0
        %v1950 = vadd.f32 0.0, %v1949
        %1951 = vdwg.mxu0
        %1952 = vmatpush.msra.mxu0 0.0
        %1953 = vmatpush.msra.mxu0 0.0
        %1954 = vmatpush.msra.mxu0 0.0
        %1955 = vmatpush.msra.mxu0 0.0
        %1956 = vmatpush.msra.mxu0 0.0
        %1957 = vmatpush.msra.mxu0 0.0
        %1958 = vmatpush.msra.mxu0 0.0
        %1959 = vmatpush.msra.mxu0 0.0
        %1960 = vmatpush.msra.mxu0 0.0
        %1961 = vmatpush.msra.mxu0 0.0
        %1962 = vmatpush.msra.mxu0 0.0
        %1963 = vmatpush.msra.mxu0 0.0
        %v1964 = vand.u32 %v508, 4294901760
        %v1965 = vsub.f32 %v508, %v1964
        %v1966 = vand.u32 %v1965, 4294901760
        %v1967 = vsub.f32 %v1965, %v1966
        %v1968 = vand.u32 %v1967, 4294901760
        %1969 = vmatpush.msra.mxu0 %v1968
        %v1970 = vand.u32 %v507, 4294901760
        %v1971 = vsub.f32 %v507, %v1970
        %v1972 = vand.u32 %v1971, 4294901760
        %v1973 = vsub.f32 %v1971, %v1972
        %v1974 = vand.u32 %v1973, 4294901760
        %1975 = vmatpush.msra.mxu0 %v1974
        %v1976 = vand.u32 %v506, 4294901760
        %v1977 = vsub.f32 %v506, %v1976
        %v1978 = vand.u32 %v1977, 4294901760
        %v1979 = vsub.f32 %v1977, %v1978
        %v1980 = vand.u32 %v1979, 4294901760
        %1981 = vmatpush.msra.mxu0 %v1980
        %v1982 = vand.u32 %v505, 4294901760
        %v1983 = vsub.f32 %v505, %v1982
        %v1984 = vand.u32 %v1983, 4294901760
        %v1985 = vsub.f32 %v1983, %v1984
        %v1986 = vand.u32 %v1985, 4294901760
        %1987 = vmatpush.msra.mxu0 %v1986
        %v1988 = vand.u32 %v1921, 4294901760
        %1989 = vmatmul.f32.gmra.mxu0 %v1988
        %v1990 = vpop.f32.mrf.mxu0
        %v1991 = vadd.f32 %v1950, %v1990
        %1992 = vdwg.mxu0
        %1993 = vmatpush.msra.mxu0 0.0
        %1994 = vmatpush.msra.mxu0 0.0
        %1995 = vmatpush.msra.mxu0 0.0
        %1996 = vmatpush.msra.mxu0 0.0
        %1997 = vmatpush.msra.mxu0 0.0
        %1998 = vmatpush.msra.mxu0 0.0
        %1999 = vmatpush.msra.mxu0 0.0
        %2000 = vmatpush.msra.mxu0 0.0
        %2001 = vmatpush.msra.mxu0 0.0
        %2002 = vmatpush.msra.mxu0 0.0
        %2003 = vmatpush.msra.mxu0 0.0
        %2004 = vmatpush.msra.mxu0 0.0
        %v2005 = vand.u32 %v508, 4294901760
        %v2006 = vsub.f32 %v508, %v2005
        %2007 = vmatpush.msra.mxu0 %v2006
        %v2008 = vand.u32 %v507, 4294901760
        %v2009 = vsub.f32 %v507, %v2008
        %2010 = vmatpush.msra.mxu0 %v2009
        %v2011 = vand.u32 %v506, 4294901760
        %v2012 = vsub.f32 %v506, %v2011
        %2013 = vmatpush.msra.mxu0 %v2012
        %v2014 = vand.u32 %v505, 4294901760
        %v2015 = vsub.f32 %v505, %v2014
        %2016 = vmatpush.msra.mxu0 %v2015
        %v2017 = vand.u32 %v1921, 4294901760
        %v2018 = vsub.f32 %v1921, %v2017
        %2019 = vmatmul.f32.gmra.mxu0 %v2018
        %v2020 = vpop.f32.mrf.mxu0
        %v2021 = vadd.f32 %v1991, %v2020
        %2022 = vdwg.mxu0
        %2023 = vmatpush.msra.mxu0 0.0
        %2024 = vmatpush.msra.mxu0 0.0
        %2025 = vmatpush.msra.mxu0 0.0
        %2026 = vmatpush.msra.mxu0 0.0
        %2027 = vmatpush.msra.mxu0 0.0
        %2028 = vmatpush.msra.mxu0 0.0
        %2029 = vmatpush.msra.mxu0 0.0
        %2030 = vmatpush.msra.mxu0 0.0
        %2031 = vmatpush.msra.mxu0 0.0
        %2032 = vmatpush.msra.mxu0 0.0
        %2033 = vmatpush.msra.mxu0 0.0
        %2034 = vmatpush.msra.mxu0 0.0
        %v2035 = vand.u32 %v508, 4294901760
        %2036 = vmatpush.msra.mxu0 %v2035
        %v2037 = vand.u32 %v507, 4294901760
        %2038 = vmatpush.msra.mxu0 %v2037
        %v2039 = vand.u32 %v506, 4294901760
        %2040 = vmatpush.msra.mxu0 %v2039
        %v2041 = vand.u32 %v505, 4294901760
        %2042 = vmatpush.msra.mxu0 %v2041
        %v2043 = vand.u32 %v1921, 4294901760
        %v2044 = vsub.f32 %v1921, %v2043
        %v2045 = vand.u32 %v2044, 4294901760
        %2046 = vmatmul.f32.gmra.mxu0 %v2045
        %v2047 = vpop.f32.mrf.mxu0
        %v2048 = vadd.f32 %v2021, %v2047
        %2049 = vdwg.mxu0
        %2050 = vmatpush.msra.mxu0 0.0
        %2051 = vmatpush.msra.mxu0 0.0
        %2052 = vmatpush.msra.mxu0 0.0
        %2053 = vmatpush.msra.mxu0 0.0
        %2054 = vmatpush.msra.mxu0 0.0
        %2055 = vmatpush.msra.mxu0 0.0
        %2056 = vmatpush.msra.mxu0 0.0
        %2057 = vmatpush.msra.mxu0 0.0
        %2058 = vmatpush.msra.mxu0 0.0
        %2059 = vmatpush.msra.mxu0 0.0
        %2060 = vmatpush.msra.mxu0 0.0
        %2061 = vmatpush.msra.mxu0 0.0
        %v2062 = vand.u32 %v508, 4294901760
        %v2063 = vsub.f32 %v508, %v2062
        %v2064 = vand.u32 %v2063, 4294901760
        %2065 = vmatpush.msra.mxu0 %v2064
        %v2066 = vand.u32 %v507, 4294901760
        %v2067 = vsub.f32 %v507, %v2066
        %v2068 = vand.u32 %v2067, 4294901760
        %2069 = vmatpush.msra.mxu0 %v2068
        %v2070 = vand.u32 %v506, 4294901760
        %v2071 = vsub.f32 %v506, %v2070
        %v2072 = vand.u32 %v2071, 4294901760
        %2073 = vmatpush.msra.mxu0 %v2072
        %v2074 = vand.u32 %v505, 4294901760
        %v2075 = vsub.f32 %v505, %v2074
        %v2076 = vand.u32 %v2075, 4294901760
        %2077 = vmatpush.msra.mxu0 %v2076
        %v2078 = vand.u32 %v1921, 4294901760
        %2079 = vmatmul.f32.gmra.mxu0 %v2078
        %v2080 = vpop.f32.mrf.mxu0
        %v2081 = vadd.f32 %v2048, %v2080
        %2082 = vdwg.mxu0
        %2083 = vmatpush.msra.mxu0 0.0
        %2084 = vmatpush.msra.mxu0 0.0
        %2085 = vmatpush.msra.mxu0 0.0
        %2086 = vmatpush.msra.mxu0 0.0
        %2087 = vmatpush.msra.mxu0 0.0
        %2088 = vmatpush.msra.mxu0 0.0
        %2089 = vmatpush.msra.mxu0 0.0
        %2090 = vmatpush.msra.mxu0 0.0
        %2091 = vmatpush.msra.mxu0 0.0
        %2092 = vmatpush.msra.mxu0 0.0
        %2093 = vmatpush.msra.mxu0 0.0
        %2094 = vmatpush.msra.mxu0 0.0
        %v2095 = vand.u32 %v508, 4294901760
        %2096 = vmatpush.msra.mxu0 %v2095
        %v2097 = vand.u32 %v507, 4294901760
        %2098 = vmatpush.msra.mxu0 %v2097
        %v2099 = vand.u32 %v506, 4294901760
        %2100 = vmatpush.msra.mxu0 %v2099
        %v2101 = vand.u32 %v505, 4294901760
        %2102 = vmatpush.msra.mxu0 %v2101
        %v2103 = vand.u32 %v1921, 4294901760
        %2104 = vmatmul.f32.gmra.mxu0 %v2103
        %v2105 = vpop.f32.mrf.mxu0
        %v2106 = vadd.f32 %v2081, %v2105
        %2107 = vdwg.mxu0
        %v2109 = vrot.slane %v2106, 6
        %v2110 = vrot.slane %v2106, 7
        %v2113 = vadd.f32 %v499, %v2109
        %v2114 = vadd.f32 %v503, %v2110
        %v2115 = vxor.u32 %v2113, 2147483648
        %v2116 = vxor.u32 %v2114, 2147483648
        %v2117 = vmul.f32 %v2115, 1.442695
        %v2118 = vpow.pop %v2117
        %v2119 = vmul.f32 %v2116, 1.442695
        %v2120 = vpow.pop %v2119
        %v2121 = vadd.f32 %v2118, 1.0
        %v2122 = vadd.f32 %v2120, 1.0
        %v2123 = vrcp.pop %v2121
        %v2124 = vmul.f32 %v2121, %v2123
        %v2125 = vsub.f32 1.0, %v2124
        %v2126 = vmul.f32 %v2123, %v2125
        %v2127 = vadd.f32 %v2123, %v2126
        %vm2128 = vweird.f32 %v2121
        %vm2129 = vweird.f32 %v2123
        %vm2130 = vmor %vm2128, %vm2129
        %v2131 = vsel %vm2130, %v2123, %v2127
        %v2132 = vand.u32 2147483647, %v2121
        %vm2133 = vcmp.eq.f32.partialorder %v2132, 8.507059e+37
        %v2134 = vand.u32 %v2121, 2147483648
        %v2135 = vor.u32 1.1754944e-38, %v2134
        %v2136 = vsel %vm2133, %v2135, %v2131
        %v2137 = vmul.f32 1.0, %v2136
        %v2138 = vrcp.pop %v2122
        %v2139 = vmul.f32 %v2122, %v2138
        %v2140 = vsub.f32 1.0, %v2139
        %v2141 = vmul.f32 %v2138, %v2140
        %v2142 = vadd.f32 %v2138, %v2141
        %vm2143 = vweird.f32 %v2122
        %vm2144 = vweird.f32 %v2138
        %vm2145 = vmor %vm2143, %vm2144
        %v2146 = vsel %vm2145, %v2138, %v2142
        %v2147 = vand.u32 2147483647, %v2122
        %vm2148 = vcmp.eq.f32.partialorder %v2147, 8.507059e+37
        %v2149 = vand.u32 %v2122, 2147483648
        %v2150 = vor.u32 1.1754944e-38, %v2149
        %v2151 = vsel %vm2148, %v2150, %v2146
        %v2152 = vmul.f32 1.0, %v2151
        %v2153 = vtanh.pop %v2113
        %v2154 = vtanh.pop %v2114
        %v2157 = vrot.slane %v1900, 1
        %v2158 = vrot.slane %v1901, 1
        %v2161 = vmul.f32 %v2137, %v2157
        %v2162 = vmul.f32 %v2152, %v2158
        %2165 = vrot.lane.b32.xlu0 %v2153, 64
        %v2166 = vpop.permute.xlu0 %2165
        %2167 = vrot.lane.b32.xlu0 %v2154, 64
        %v2168 = vpop.permute.xlu0 %2167
        %v2171 = vmul.f32 %v2137, %v2166
        %v2172 = vmul.f32 %v2152, %v2168
        %2175 = vrot.lane.b32.xlu0 %v2171, 32
        %v2176 = vpop.permute.xlu0 %2175
        %2177 = vrot.lane.b32.xlu0 %v2172, 32
        %v2178 = vpop.permute.xlu0 %2177
        %v2181 = vadd.f32 %v2161, %v2176
        %v2182 = vadd.f32 %v2162, %v2178
        %v2183 = vtanh.pop %v2181
        %v2184 = vtanh.pop %v2182
        %2187 = vrot.lane.b32.xlu0 %v2183, 64
        %v2188 = vpop.permute.xlu0 %2187
        %2189 = vrot.lane.b32.xlu0 %v2184, 64
        %v2190 = vpop.permute.xlu0 %2189
        %v2193 = vmul.f32 %v2137, %v2188
        %v2194 = vmul.f32 %v2152, %v2190
        %v2197 = vrot.slane %v2193, 2
        %v2198 = vrot.slane %v2194, 1
        %v2199 = vsel %vm793, %v2198, %v2197
        %2200 = vrot.lane.b32.xlu0 %v2199, 32
        %v2201 = vpop.permute.xlu0 %2200
        %v2202 = vsel %vm282, %v2201, 0
        %2204 = vmatpush.msra.mxu0 0.0
        %2205 = vmatpush.msra.mxu0 0.0
        %2206 = vmatpush.msra.mxu0 0.0
        %2207 = vmatpush.msra.mxu0 0.0
        %2208 = vmatpush.msra.mxu0 0.0
        %2209 = vmatpush.msra.mxu0 0.0
        %2210 = vmatpush.msra.mxu0 0.0
        %2211 = vmatpush.msra.mxu0 0.0
        %2212 = vmatpush.msra.mxu0 0.0
        %2213 = vmatpush.msra.mxu0 0.0
        %2214 = vmatpush.msra.mxu0 0.0
        %2215 = vmatpush.msra.mxu0 0.0
        %v2216 = vand.u32 %v508, 4294901760
        %2217 = vmatpush.msra.mxu0 %v2216
        %v2218 = vand.u32 %v507, 4294901760
        %2219 = vmatpush.msra.mxu0 %v2218
        %v2220 = vand.u32 %v506, 4294901760
        %2221 = vmatpush.msra.mxu0 %v2220
        %v2222 = vand.u32 %v505, 4294901760
        %2223 = vmatpush.msra.mxu0 %v2222
        %v2224 = vand.u32 %v2202, 4294901760
        %v2225 = vsub.f32 %v2202, %v2224
        %v2226 = vand.u32 %v2225, 4294901760
        %v2227 = vsub.f32 %v2225, %v2226
        %v2228 = vand.u32 %v2227, 4294901760
        %2229 = vmatmul.f32.gmra.mxu0 %v2228
        %v2230 = vpop.f32.mrf.mxu0
        %v2231 = vadd.f32 0.0, %v2230
        %2232 = vdwg.mxu0
        %2233 = vmatpush.msra.mxu0 0.0
        %2234 = vmatpush.msra.mxu0 0.0
        %2235 = vmatpush.msra.mxu0 0.0
        %2236 = vmatpush.msra.mxu0 0.0
        %2237 = vmatpush.msra.mxu0 0.0
        %2238 = vmatpush.msra.mxu0 0.0
        %2239 = vmatpush.msra.mxu0 0.0
        %2240 = vmatpush.msra.mxu0 0.0
        %2241 = vmatpush.msra.mxu0 0.0
        %2242 = vmatpush.msra.mxu0 0.0
        %2243 = vmatpush.msra.mxu0 0.0
        %2244 = vmatpush.msra.mxu0 0.0
        %v2245 = vand.u32 %v508, 4294901760
        %v2246 = vsub.f32 %v508, %v2245
        %v2247 = vand.u32 %v2246, 4294901760
        %v2248 = vsub.f32 %v2246, %v2247
        %v2249 = vand.u32 %v2248, 4294901760
        %2250 = vmatpush.msra.mxu0 %v2249
        %v2251 = vand.u32 %v507, 4294901760
        %v2252 = vsub.f32 %v507, %v2251
        %v2253 = vand.u32 %v2252, 4294901760
        %v2254 = vsub.f32 %v2252, %v2253
        %v2255 = vand.u32 %v2254, 4294901760
        %2256 = vmatpush.msra.mxu0 %v2255
        %v2257 = vand.u32 %v506, 4294901760
        %v2258 = vsub.f32 %v506, %v2257
        %v2259 = vand.u32 %v2258, 4294901760
        %v2260 = vsub.f32 %v2258, %v2259
        %v2261 = vand.u32 %v2260, 4294901760
        %2262 = vmatpush.msra.mxu0 %v2261
        %v2263 = vand.u32 %v505, 4294901760
        %v2264 = vsub.f32 %v505, %v2263
        %v2265 = vand.u32 %v2264, 4294901760
        %v2266 = vsub.f32 %v2264, %v2265
        %v2267 = vand.u32 %v2266, 4294901760
        %2268 = vmatpush.msra.mxu0 %v2267
        %v2269 = vand.u32 %v2202, 4294901760
        %2270 = vmatmul.f32.gmra.mxu0 %v2269
        %v2271 = vpop.f32.mrf.mxu0
        %v2272 = vadd.f32 %v2231, %v2271
        %2273 = vdwg.mxu0
        %2274 = vmatpush.msra.mxu0 0.0
        %2275 = vmatpush.msra.mxu0 0.0
        %2276 = vmatpush.msra.mxu0 0.0
        %2277 = vmatpush.msra.mxu0 0.0
        %2278 = vmatpush.msra.mxu0 0.0
        %2279 = vmatpush.msra.mxu0 0.0
        %2280 = vmatpush.msra.mxu0 0.0
        %2281 = vmatpush.msra.mxu0 0.0
        %2282 = vmatpush.msra.mxu0 0.0
        %2283 = vmatpush.msra.mxu0 0.0
        %2284 = vmatpush.msra.mxu0 0.0
        %2285 = vmatpush.msra.mxu0 0.0
        %v2286 = vand.u32 %v508, 4294901760
        %v2287 = vsub.f32 %v508, %v2286
        %2288 = vmatpush.msra.mxu0 %v2287
        %v2289 = vand.u32 %v507, 4294901760
        %v2290 = vsub.f32 %v507, %v2289
        %2291 = vmatpush.msra.mxu0 %v2290
        %v2292 = vand.u32 %v506, 4294901760
        %v2293 = vsub.f32 %v506, %v2292
        %2294 = vmatpush.msra.mxu0 %v2293
        %v2295 = vand.u32 %v505, 4294901760
        %v2296 = vsub.f32 %v505, %v2295
        %2297 = vmatpush.msra.mxu0 %v2296
        %v2298 = vand.u32 %v2202, 4294901760
        %v2299 = vsub.f32 %v2202, %v2298
        %2300 = vmatmul.f32.gmra.mxu0 %v2299
        %v2301 = vpop.f32.mrf.mxu0
        %v2302 = vadd.f32 %v2272, %v2301
        %2303 = vdwg.mxu0
        %2304 = vmatpush.msra.mxu0 0.0
        %2305 = vmatpush.msra.mxu0 0.0
        %2306 = vmatpush.msra.mxu0 0.0
        %2307 = vmatpush.msra.mxu0 0.0
        %2308 = vmatpush.msra.mxu0 0.0
        %2309 = vmatpush.msra.mxu0 0.0
        %2310 = vmatpush.msra.mxu0 0.0
        %2311 = vmatpush.msra.mxu0 0.0
        %2312 = vmatpush.msra.mxu0 0.0
        %2313 = vmatpush.msra.mxu0 0.0
        %2314 = vmatpush.msra.mxu0 0.0
        %2315 = vmatpush.msra.mxu0 0.0
        %v2316 = vand.u32 %v508, 4294901760
        %2317 = vmatpush.msra.mxu0 %v2316
        %v2318 = vand.u32 %v507, 4294901760
        %2319 = vmatpush.msra.mxu0 %v2318
        %v2320 = vand.u32 %v506, 4294901760
        %2321 = vmatpush.msra.mxu0 %v2320
        %v2322 = vand.u32 %v505, 4294901760
        %2323 = vmatpush.msra.mxu0 %v2322
        %v2324 = vand.u32 %v2202, 4294901760
        %v2325 = vsub.f32 %v2202, %v2324
        %v2326 = vand.u32 %v2325, 4294901760
        %2327 = vmatmul.f32.gmra.mxu0 %v2326
        %v2328 = vpop.f32.mrf.mxu0
        %v2329 = vadd.f32 %v2302, %v2328
        %2330 = vdwg.mxu0
        %2331 = vmatpush.msra.mxu0 0.0
        %2332 = vmatpush.msra.mxu0 0.0
        %2333 = vmatpush.msra.mxu0 0.0
        %2334 = vmatpush.msra.mxu0 0.0
        %2335 = vmatpush.msra.mxu0 0.0
        %2336 = vmatpush.msra.mxu0 0.0
        %2337 = vmatpush.msra.mxu0 0.0
        %2338 = vmatpush.msra.mxu0 0.0
        %2339 = vmatpush.msra.mxu0 0.0
        %2340 = vmatpush.msra.mxu0 0.0
        %2341 = vmatpush.msra.mxu0 0.0
        %2342 = vmatpush.msra.mxu0 0.0
        %v2343 = vand.u32 %v508, 4294901760
        %v2344 = vsub.f32 %v508, %v2343
        %v2345 = vand.u32 %v2344, 4294901760
        %2346 = vmatpush.msra.mxu0 %v2345
        %v2347 = vand.u32 %v507, 4294901760
        %v2348 = vsub.f32 %v507, %v2347
        %v2349 = vand.u32 %v2348, 4294901760
        %2350 = vmatpush.msra.mxu0 %v2349
        %v2351 = vand.u32 %v506, 4294901760
        %v2352 = vsub.f32 %v506, %v2351
        %v2353 = vand.u32 %v2352, 4294901760
        %2354 = vmatpush.msra.mxu0 %v2353
        %v2355 = vand.u32 %v505, 4294901760
        %v2356 = vsub.f32 %v505, %v2355
        %v2357 = vand.u32 %v2356, 4294901760
        %2358 = vmatpush.msra.mxu0 %v2357
        %v2359 = vand.u32 %v2202, 4294901760
        %2360 = vmatmul.f32.gmra.mxu0 %v2359
        %v2361 = vpop.f32.mrf.mxu0
        %v2362 = vadd.f32 %v2329, %v2361
        %2363 = vdwg.mxu0
        %2364 = vmatpush.msra.mxu0 0.0
        %2365 = vmatpush.msra.mxu0 0.0
        %2366 = vmatpush.msra.mxu0 0.0
        %2367 = vmatpush.msra.mxu0 0.0
        %2368 = vmatpush.msra.mxu0 0.0
        %2369 = vmatpush.msra.mxu0 0.0
        %2370 = vmatpush.msra.mxu0 0.0
        %2371 = vmatpush.msra.mxu0 0.0
        %2372 = vmatpush.msra.mxu0 0.0
        %2373 = vmatpush.msra.mxu0 0.0
        %2374 = vmatpush.msra.mxu0 0.0
        %2375 = vmatpush.msra.mxu0 0.0
        %v2376 = vand.u32 %v508, 4294901760
        %2377 = vmatpush.msra.mxu0 %v2376
        %v2378 = vand.u32 %v507, 4294901760
        %2379 = vmatpush.msra.mxu0 %v2378
        %v2380 = vand.u32 %v506, 4294901760
        %2381 = vmatpush.msra.mxu0 %v2380
        %v2382 = vand.u32 %v505, 4294901760
        %2383 = vmatpush.msra.mxu0 %v2382
        %v2384 = vand.u32 %v2202, 4294901760
        %2385 = vmatmul.f32.gmra.mxu0 %v2384
        %v2386 = vpop.f32.mrf.mxu0
        %v2387 = vadd.f32 %v2362, %v2386
        %2388 = vdwg.mxu0
        %v2390 = vrot.slane %v2387, 7
        %v2393 = vadd.f32 %v499, %v2390
        %v2394 = vadd.f32 %v503, %v2387
        %v2395 = vxor.u32 %v2393, 2147483648
        %v2396 = vxor.u32 %v2394, 2147483648
        %v2397 = vmul.f32 %v2395, 1.442695
        %v2398 = vpow.pop %v2397
        %v2399 = vmul.f32 %v2396, 1.442695
        %v2400 = vpow.pop %v2399
        %v2401 = vadd.f32 %v2398, 1.0
        %v2402 = vadd.f32 %v2400, 1.0
        %v2403 = vrcp.pop %v2401
        %v2404 = vmul.f32 %v2401, %v2403
        %v2405 = vsub.f32 1.0, %v2404
        %v2406 = vmul.f32 %v2403, %v2405
        %v2407 = vadd.f32 %v2403, %v2406
        %vm2408 = vweird.f32 %v2401
        %vm2409 = vweird.f32 %v2403
        %vm2410 = vmor %vm2408, %vm2409
        %v2411 = vsel %vm2410, %v2403, %v2407
        %v2412 = vand.u32 2147483647, %v2401
        %vm2413 = vcmp.eq.f32.partialorder %v2412, 8.507059e+37
        %v2414 = vand.u32 %v2401, 2147483648
        %v2415 = vor.u32 1.1754944e-38, %v2414
        %v2416 = vsel %vm2413, %v2415, %v2411
        %v2417 = vmul.f32 1.0, %v2416
        %v2418 = vrcp.pop %v2402
        %v2419 = vmul.f32 %v2402, %v2418
        %v2420 = vsub.f32 1.0, %v2419
        %v2421 = vmul.f32 %v2418, %v2420
        %v2422 = vadd.f32 %v2418, %v2421
        %vm2423 = vweird.f32 %v2402
        %vm2424 = vweird.f32 %v2418
        %vm2425 = vmor %vm2423, %vm2424
        %v2426 = vsel %vm2425, %v2418, %v2422
        %v2427 = vand.u32 2147483647, %v2402
        %vm2428 = vcmp.eq.f32.partialorder %v2427, 8.507059e+37
        %v2429 = vand.u32 %v2402, 2147483648
        %v2430 = vor.u32 1.1754944e-38, %v2429
        %v2431 = vsel %vm2428, %v2430, %v2426
        %v2432 = vmul.f32 1.0, %v2431
        %v2433 = vtanh.pop %v2393
        %v2434 = vtanh.pop %v2394
        %v2437 = vrot.slane %v2181, 1
        %v2438 = vrot.slane %v2182, 1
        %v2441 = vmul.f32 %v2417, %v2437
        %v2442 = vmul.f32 %v2432, %v2438
        %2445 = vrot.lane.b32.xlu0 %v2433, 64
        %v2446 = vpop.permute.xlu0 %2445
        %2447 = vrot.lane.b32.xlu0 %v2434, 64
        %v2448 = vpop.permute.xlu0 %2447
        %v2451 = vmul.f32 %v2417, %v2446
        %v2452 = vmul.f32 %v2432, %v2448
        %2455 = vrot.lane.b32.xlu0 %v2451, 32
        %v2456 = vpop.permute.xlu0 %2455
        %2457 = vrot.lane.b32.xlu0 %v2452, 32
        %v2458 = vpop.permute.xlu0 %2457
        %v2461 = vadd.f32 %v2441, %v2456
        %v2462 = vadd.f32 %v2442, %v2458
        %v2463 = vtanh.pop %v2461
        %v2464 = vtanh.pop %v2462
        %2467 = vrot.lane.b32.xlu0 %v2463, 64
        %v2468 = vpop.permute.xlu0 %2467
        %2469 = vrot.lane.b32.xlu0 %v2464, 64
        %v2470 = vpop.permute.xlu0 %2469
        %v2473 = vmul.f32 %v2417, %v2468
        %v2474 = vmul.f32 %v2432, %v2470
        %v2477 = vrot.slane %v2473, 1
        %v2478 = vsel %vm793, %v2474, %v2477
        %2479 = vrot.lane.b32.xlu0 %v2478, 32
        %v2480 = vpop.permute.xlu0 %2479
        %v2481 = vsel %vm282, %v2480, 0
        %2483 = vmatpush.msra.mxu0 0.0
        %2484 = vmatpush.msra.mxu0 0.0
        %2485 = vmatpush.msra.mxu0 0.0
        %2486 = vmatpush.msra.mxu0 0.0
        %2487 = vmatpush.msra.mxu0 0.0
        %2488 = vmatpush.msra.mxu0 0.0
        %2489 = vmatpush.msra.mxu0 0.0
        %2490 = vmatpush.msra.mxu0 0.0
        %2491 = vmatpush.msra.mxu0 0.0
        %2492 = vmatpush.msra.mxu0 0.0
        %2493 = vmatpush.msra.mxu0 0.0
        %2494 = vmatpush.msra.mxu0 0.0
        %v2495 = vand.u32 %v508, 4294901760
        %2496 = vmatpush.msra.mxu0 %v2495
        %v2497 = vand.u32 %v507, 4294901760
        %2498 = vmatpush.msra.mxu0 %v2497
        %v2499 = vand.u32 %v506, 4294901760
        %2500 = vmatpush.msra.mxu0 %v2499
        %v2501 = vand.u32 %v505, 4294901760
        %2502 = vmatpush.msra.mxu0 %v2501
        %v2503 = vand.u32 %v2481, 4294901760
        %v2504 = vsub.f32 %v2481, %v2503
        %v2505 = vand.u32 %v2504, 4294901760
        %v2506 = vsub.f32 %v2504, %v2505
        %v2507 = vand.u32 %v2506, 4294901760
        %2508 = vmatmul.f32.gmra.mxu0 %v2507
        %v2509 = vpop.f32.mrf.mxu0
        %v2510 = vadd.f32 0.0, %v2509
        %2511 = vdwg.mxu0
        %2512 = vmatpush.msra.mxu0 0.0
        %2513 = vmatpush.msra.mxu0 0.0
        %2514 = vmatpush.msra.mxu0 0.0
        %2515 = vmatpush.msra.mxu0 0.0
        %2516 = vmatpush.msra.mxu0 0.0
        %2517 = vmatpush.msra.mxu0 0.0
        %2518 = vmatpush.msra.mxu0 0.0
        %2519 = vmatpush.msra.mxu0 0.0
        %2520 = vmatpush.msra.mxu0 0.0
        %2521 = vmatpush.msra.mxu0 0.0
        %2522 = vmatpush.msra.mxu0 0.0
        %2523 = vmatpush.msra.mxu0 0.0
        %v2524 = vand.u32 %v508, 4294901760
        %v2525 = vsub.f32 %v508, %v2524
        %v2526 = vand.u32 %v2525, 4294901760
        %v2527 = vsub.f32 %v2525, %v2526
        %v2528 = vand.u32 %v2527, 4294901760
        %2529 = vmatpush.msra.mxu0 %v2528
        %v2530 = vand.u32 %v507, 4294901760
        %v2531 = vsub.f32 %v507, %v2530
        %v2532 = vand.u32 %v2531, 4294901760
        %v2533 = vsub.f32 %v2531, %v2532
        %v2534 = vand.u32 %v2533, 4294901760
        %2535 = vmatpush.msra.mxu0 %v2534
        %v2536 = vand.u32 %v506, 4294901760
        %v2537 = vsub.f32 %v506, %v2536
        %v2538 = vand.u32 %v2537, 4294901760
        %v2539 = vsub.f32 %v2537, %v2538
        %v2540 = vand.u32 %v2539, 4294901760
        %2541 = vmatpush.msra.mxu0 %v2540
        %v2542 = vand.u32 %v505, 4294901760
        %v2543 = vsub.f32 %v505, %v2542
        %v2544 = vand.u32 %v2543, 4294901760
        %v2545 = vsub.f32 %v2543, %v2544
        %v2546 = vand.u32 %v2545, 4294901760
        %2547 = vmatpush.msra.mxu0 %v2546
        %v2548 = vand.u32 %v2481, 4294901760
        %2549 = vmatmul.f32.gmra.mxu0 %v2548
        %v2550 = vpop.f32.mrf.mxu0
        %v2551 = vadd.f32 %v2510, %v2550
        %2552 = vdwg.mxu0
        %2553 = vmatpush.msra.mxu0 0.0
        %2554 = vmatpush.msra.mxu0 0.0
        %2555 = vmatpush.msra.mxu0 0.0
        %2556 = vmatpush.msra.mxu0 0.0
        %2557 = vmatpush.msra.mxu0 0.0
        %2558 = vmatpush.msra.mxu0 0.0
        %2559 = vmatpush.msra.mxu0 0.0
        %2560 = vmatpush.msra.mxu0 0.0
        %2561 = vmatpush.msra.mxu0 0.0
        %2562 = vmatpush.msra.mxu0 0.0
        %2563 = vmatpush.msra.mxu0 0.0
        %2564 = vmatpush.msra.mxu0 0.0
        %v2565 = vand.u32 %v508, 4294901760
        %v2566 = vsub.f32 %v508, %v2565
        %2567 = vmatpush.msra.mxu0 %v2566
        %v2568 = vand.u32 %v507, 4294901760
        %v2569 = vsub.f32 %v507, %v2568
        %2570 = vmatpush.msra.mxu0 %v2569
        %v2571 = vand.u32 %v506, 4294901760
        %v2572 = vsub.f32 %v506, %v2571
        %2573 = vmatpush.msra.mxu0 %v2572
        %v2574 = vand.u32 %v505, 4294901760
        %v2575 = vsub.f32 %v505, %v2574
        %2576 = vmatpush.msra.mxu0 %v2575
        %v2577 = vand.u32 %v2481, 4294901760
        %v2578 = vsub.f32 %v2481, %v2577
        %2579 = vmatmul.f32.gmra.mxu0 %v2578
        %v2580 = vpop.f32.mrf.mxu0
        %v2581 = vadd.f32 %v2551, %v2580
        %2582 = vdwg.mxu0
        %2583 = vmatpush.msra.mxu0 0.0
        %2584 = vmatpush.msra.mxu0 0.0
        %2585 = vmatpush.msra.mxu0 0.0
        %2586 = vmatpush.msra.mxu0 0.0
        %2587 = vmatpush.msra.mxu0 0.0
        %2588 = vmatpush.msra.mxu0 0.0
        %2589 = vmatpush.msra.mxu0 0.0
        %2590 = vmatpush.msra.mxu0 0.0
        %2591 = vmatpush.msra.mxu0 0.0
        %2592 = vmatpush.msra.mxu0 0.0
        %2593 = vmatpush.msra.mxu0 0.0
        %2594 = vmatpush.msra.mxu0 0.0
        %v2595 = vand.u32 %v508, 4294901760
        %2596 = vmatpush.msra.mxu0 %v2595
        %v2597 = vand.u32 %v507, 4294901760
        %2598 = vmatpush.msra.mxu0 %v2597
        %v2599 = vand.u32 %v506, 4294901760
        %2600 = vmatpush.msra.mxu0 %v2599
        %v2601 = vand.u32 %v505, 4294901760
        %2602 = vmatpush.msra.mxu0 %v2601
        %v2603 = vand.u32 %v2481, 4294901760
        %v2604 = vsub.f32 %v2481, %v2603
        %v2605 = vand.u32 %v2604, 4294901760
        %2606 = vmatmul.f32.gmra.mxu0 %v2605
        %v2607 = vpop.f32.mrf.mxu0
        %v2608 = vadd.f32 %v2581, %v2607
        %2609 = vdwg.mxu0
        %2610 = vmatpush.msra.mxu0 0.0
        %2611 = vmatpush.msra.mxu0 0.0
        %2612 = vmatpush.msra.mxu0 0.0
        %2613 = vmatpush.msra.mxu0 0.0
        %2614 = vmatpush.msra.mxu0 0.0
        %2615 = vmatpush.msra.mxu0 0.0
        %2616 = vmatpush.msra.mxu0 0.0
        %2617 = vmatpush.msra.mxu0 0.0
        %2618 = vmatpush.msra.mxu0 0.0
        %2619 = vmatpush.msra.mxu0 0.0
        %2620 = vmatpush.msra.mxu0 0.0
        %2621 = vmatpush.msra.mxu0 0.0
        %v2622 = vand.u32 %v508, 4294901760
        %v2623 = vsub.f32 %v508, %v2622
        %v2624 = vand.u32 %v2623, 4294901760
        %2625 = vmatpush.msra.mxu0 %v2624
        %v2626 = vand.u32 %v507, 4294901760
        %v2627 = vsub.f32 %v507, %v2626
        %v2628 = vand.u32 %v2627, 4294901760
        %2629 = vmatpush.msra.mxu0 %v2628
        %v2630 = vand.u32 %v506, 4294901760
        %v2631 = vsub.f32 %v506, %v2630
        %v2632 = vand.u32 %v2631, 4294901760
        %2633 = vmatpush.msra.mxu0 %v2632
        %v2634 = vand.u32 %v505, 4294901760
        %v2635 = vsub.f32 %v505, %v2634
        %v2636 = vand.u32 %v2635, 4294901760
        %2637 = vmatpush.msra.mxu0 %v2636
        %v2638 = vand.u32 %v2481, 4294901760
        %2639 = vmatmul.f32.gmra.mxu0 %v2638
        %v2640 = vpop.f32.mrf.mxu0
        %v2641 = vadd.f32 %v2608, %v2640
        %2642 = vdwg.mxu0
        %2643 = vmatpush.msra.mxu0 0.0
        %2644 = vmatpush.msra.mxu0 0.0
        %2645 = vmatpush.msra.mxu0 0.0
        %2646 = vmatpush.msra.mxu0 0.0
        %2647 = vmatpush.msra.mxu0 0.0
        %2648 = vmatpush.msra.mxu0 0.0
        %2649 = vmatpush.msra.mxu0 0.0
        %2650 = vmatpush.msra.mxu0 0.0
        %2651 = vmatpush.msra.mxu0 0.0
        %2652 = vmatpush.msra.mxu0 0.0
        %2653 = vmatpush.msra.mxu0 0.0
        %2654 = vmatpush.msra.mxu0 0.0
        %v2655 = vand.u32 %v508, 4294901760
        %2656 = vmatpush.msra.mxu0 %v2655
        %v2657 = vand.u32 %v507, 4294901760
        %2658 = vmatpush.msra.mxu0 %v2657
        %v2659 = vand.u32 %v506, 4294901760
        %2660 = vmatpush.msra.mxu0 %v2659
        %v2661 = vand.u32 %v505, 4294901760
        %2662 = vmatpush.msra.mxu0 %v2661
        %v2663 = vand.u32 %v2481, 4294901760
        %2664 = vmatmul.f32.gmra.mxu0 %v2663
        %v2665 = vpop.f32.mrf.mxu0
        %v2666 = vadd.f32 %v2641, %v2665
        %2667 = vdwg.mxu0
        %v2669 = vrot.slane %v2666, 1
        %v2672 = vadd.f32 %v499, %v2666
        %v2673 = vadd.f32 %v503, %v2669
        %v2674 = vxor.u32 %v2672, 2147483648
        %v2675 = vxor.u32 %v2673, 2147483648
        %v2676 = vmul.f32 %v2674, 1.442695
        %v2677 = vpow.pop %v2676
        %v2678 = vmul.f32 %v2675, 1.442695
        %v2679 = vpow.pop %v2678
        %v2680 = vadd.f32 %v2677, 1.0
        %v2681 = vadd.f32 %v2679, 1.0
        %v2682 = vrcp.pop %v2680
        %v2683 = vmul.f32 %v2680, %v2682
        %v2684 = vsub.f32 1.0, %v2683
        %v2685 = vmul.f32 %v2682, %v2684
        %v2686 = vadd.f32 %v2682, %v2685
        %vm2687 = vweird.f32 %v2680
        %vm2688 = vweird.f32 %v2682
        %vm2689 = vmor %vm2687, %vm2688
        %v2690 = vsel %vm2689, %v2682, %v2686
        %v2691 = vand.u32 2147483647, %v2680
        %vm2692 = vcmp.eq.f32.partialorder %v2691, 8.507059e+37
        %v2693 = vand.u32 %v2680, 2147483648
        %v2694 = vor.u32 1.1754944e-38, %v2693
        %v2695 = vsel %vm2692, %v2694, %v2690
        %v2696 = vmul.f32 1.0, %v2695
        %v2697 = vrcp.pop %v2681
        %v2698 = vmul.f32 %v2681, %v2697
        %v2699 = vsub.f32 1.0, %v2698
        %v2700 = vmul.f32 %v2697, %v2699
        %v2701 = vadd.f32 %v2697, %v2700
        %vm2702 = vweird.f32 %v2681
        %vm2703 = vweird.f32 %v2697
        %vm2704 = vmor %vm2702, %vm2703
        %v2705 = vsel %vm2704, %v2697, %v2701
        %v2706 = vand.u32 2147483647, %v2681
        %vm2707 = vcmp.eq.f32.partialorder %v2706, 8.507059e+37
        %v2708 = vand.u32 %v2681, 2147483648
        %v2709 = vor.u32 1.1754944e-38, %v2708
        %v2710 = vsel %vm2707, %v2709, %v2705
        %v2711 = vmul.f32 1.0, %v2710
        %v2712 = vtanh.pop %v2672
        %v2713 = vtanh.pop %v2673
        %v2716 = vrot.slane %v2461, 1
        %v2717 = vrot.slane %v2462, 1
        %v2720 = vmul.f32 %v2696, %v2716
        %v2721 = vmul.f32 %v2711, %v2717
        %2724 = vrot.lane.b32.xlu0 %v2712, 64
        %v2725 = vpop.permute.xlu0 %2724
        %2726 = vrot.lane.b32.xlu0 %v2713, 64
        %v2727 = vpop.permute.xlu0 %2726
        %v2730 = vmul.f32 %v2696, %v2725
        %v2731 = vmul.f32 %v2711, %v2727
        %2734 = vrot.lane.b32.xlu0 %v2730, 32
        %v2735 = vpop.permute.xlu0 %2734
        %2736 = vrot.lane.b32.xlu0 %v2731, 32
        %v2737 = vpop.permute.xlu0 %2736
        %v2740 = vadd.f32 %v2720, %v2735
        %v2741 = vadd.f32 %v2721, %v2737
        %v2742 = vtanh.pop %v2740
        %v2743 = vtanh.pop %v2741
        %2746 = vrot.lane.b32.xlu0 %v2742, 64
        %v2747 = vpop.permute.xlu0 %2746
        %2748 = vrot.lane.b32.xlu0 %v2743, 64
        %v2749 = vpop.permute.xlu0 %2748
        %v2752 = vmul.f32 %v2696, %v2747
        %v2753 = vmul.f32 %v2711, %v2749
        %v2756 = vrot.slane %v2753, 7
        %v2757 = vsel %vm793, %v2756, %v2752
        %2758 = vrot.lane.b32.xlu0 %v2757, 32
        %v2759 = vpop.permute.xlu0 %2758
        %vm2761 = vcmask 254976
        %2762 = vst.msk [vmem:[#allocation2] sm:$0x3] %vm2761, %v2759
        %v2765 = vrot.slane %v2741, 7
        %v2766 = vsel %vm793, %v2765, %v2740
        %2767 = vrot.lane.b32.xlu0 %v2766, 96
        %v2768 = vpop.permute.xlu0 %2767
        %2770 = vst.msk [vmem:[#allocation3] sm:$0x3] %vm2761, %v2768
        %2771 = vst.msk [vmem:[#allocation10] sm:$0x3] %vm2761, %v2759
        // Predicated region
        $region53: #{tpu_custom_call.1} parent=35 // pred_check
          %p2772 = pneg %p143
        $region54: #{tpu_custom_call.1} parent=35 // pred_check_branch
          %2774 = sbr.rel (%p2772) target = $region56
        $region55: #{tpu_custom_call.1} parent=35 // pred_region
          %2776 = vsyncadd [#allocation6], 0
          %s2777 = smul.addr %s24, 2
          %s2778 = scalar_lea.hbm %s4, %s2777
          %s2780 = sshll.u32 [#allocation10], 4
          %s2781 = int_to_ptr.vmem [resolvable:$true] %s2780
          %s2782 = sshll.u32 %s2778, 4
          %s2783 = int_to_ptr.hbm [resolvable:$true] %s2782
          %2785 = dma.vmem_to_hbm [thread:$0]  %s2781, 32, %s2783, [#allocation6]
        $region56: #{tpu_custom_call.1} parent=35 // pred_fallthru
          _
        // Predicated region
        $region57: #{tpu_custom_call.1} parent=35 // pred_check
          %p2786 = pneg %p143
        $region58: #{tpu_custom_call.1} parent=35 // pred_check_branch
          %2788 = sbr.rel (%p2786) target = $region60
        $region59: #{tpu_custom_call.1} parent=35 // pred_region
          %2790 = dma.done [#allocation6], 32
        $region60: #{tpu_custom_call.1} parent=35 // pred_fallthru
          _
      $region36: #{tpu_custom_call.1} parent=5 // pred_fallthru
        _
      %p2791 = scmp.le.s32.totalorder 2, %s15
      // Predicated region
      $region61: #{tpu_custom_call.1} parent=5 // pred_check
        %p2792 = pneg %p2791
      $region62: #{tpu_custom_call.1} parent=5 // pred_check_branch
        %2794 = sbr.rel (%p2792) target = $region64
      $region63: #{tpu_custom_call.1} parent=5 // pred_region
        %s2795 = ssub.s32 %s15, 2
      $region64: #{tpu_custom_call.1} parent=5 // pred_fallthru
        _
    $region6: #{tpu_custom_call.1} parent=1 // loop_footer
      %s19 = sadd.s32 1, %s15
    $region7: #{tpu_custom_call.1} parent=1 // loop_footer_branch
      %14 = sbr.rel target = $region3
    $region8: #{tpu_custom_call.1} parent=1 // loop_exit
      _
    %2796 = vsyncpa [#allocation5], 1
    %s2797 = scalar_lea.sflag [#allocation5], 1
    %2798 = vsyncpa %s2797, 1
    %2799 = vsyncpa [#allocation8], 1
    %2800 = vsyncpa [#allocation6], 1
    %s2801 = scalar_lea.sflag [#allocation6], 1
    %2802 = vsyncpa %s2801, 1

</llo_original>
